<compile_context>
chip_gen: v7x
topology: tpu7x:2x2x1
jax: 0.10.0
libtpu: 0.0.40
codegen_flags: <defaults>
</compile_context>

<pallas_src>
import jax
import jax.numpy as jnp
from jax.experimental import pallas as pl
from jax.experimental.pallas import tpu as pltpu


def _pack_weights(ws):
    """Stack 2D f32 arrays into one (R, max_width) slab, each at an 8-aligned row offset."""
    width = max(int(w.shape[1]) for w in ws)
    segs, off = [], 0
    for w in ws:
        r, c = int(w.shape[0]), int(w.shape[1])
        segs.append((off, r, c))
        off += -(-r // 8) * 8
    slab = jnp.zeros((max(off, 8), width), jnp.float32)
    for (o, r, c), w in zip(segs, ws):
        slab = slab.at[o:o + r, :c].set(w.astype(jnp.float32))
    return slab, segs


def _make_kernel(segs, n_x1, n_pe3, n_x2):
    """Kernel factory; `segs` / data-slab column offsets are trace-time Python constants."""
    f32, bf16 = jnp.float32, jnp.bfloat16
    o1, o2, o3 = n_x1, n_x1 + n_pe3, n_x1 + n_pe3 + n_x2

    def kernel(data_ref, A_ref, Bm_ref, Bt_ref, W_ref, out_ref):
        def w(i):
            o, r, c = segs[i]
            return W_ref[o:o + r, 0:c]

        def mm(a, b):                       # small f32 matmul, f32 accumulation
            return jnp.dot(a, b, preferred_element_type=f32)

        def amm(x):                         # (N,N) adjacency matmul: bf16 in, f32 accumulate
            return jnp.dot(A_ref[...], x.astype(bf16), preferred_element_type=f32)

        def bmm(onehot_bf, x):              # segment matmul with bf16 one-hot operand
            return jnp.dot(onehot_bf, x.astype(bf16), preferred_element_type=f32)

        def lin(x, wi, bi):
            return mm(x, w(wi)) + w(bi)

        def relu(x):
            return jnp.maximum(x, 0.0)

        x1 = data_ref[:, 0:o1]              # (N, 256)
        pe3 = data_ref[:, o1:o2]            # (N, 36)  = cat(pe, pe, pe)
        x2 = data_ref[:, o2:o3]             # (N, 10)
        dis = data_ref[:, o3:o3 + 1]        # (N, 1)   rsqrt(deg + 1)
        Bm = Bm_ref[...]                    # (G, N) bf16 one-hot
        Bt = Bt_ref[...]                    # (N, G) bf16

        def gcn(y):                         # A_hat @ y == dis * (A @ (dis*y) + dis*y)
            ys = dis * y
            return dis * (amm(ys) + ys)

        # ------------------------------ encoder ------------------------------
        # dropout1 / dropout2: identity (eval mode)
        h0 = lin(x1, 0, 1)                                   # embed_contraction -> (N, 36)
        x1_res = relu(h0)
        h = x1_res + pe3

        # Merged MPNN pass: cat42 = [h | x2 @ Wmc] (padded projections), one A-pass.
        cat_a = mm(h, w(2)) + mm(x2, w(3))                   # (N, 42)
        h42 = relu(mm(amm(cat_a), w(4)) + w(5))              # [mpnn_feature | mpnn_class]

        # Merged GCNConv pass: one 72-wide normalized-adjacency pass.
        g72 = gcn(mm(h42, w(6))) + w(7)                      # (N, 72)
        z = mm(relu(g72), w(8)) + x1_res                     # gcn_feat + gcn_class + res

        # ------------------------- attentional pooling -----------------------
        gate = mm(relu(mm(z, w(9)) + w(10)), w(11)) + w(12)  # gate_nn(z) -> (N, 36)
        gmax = jnp.max(gate, axis=0, keepdims=True)          # global per-column max
        egate = jnp.exp(gate - gmax)
        denom = bmm(Bt, bmm(Bm, egate))                      # exact per-node segment sum
        alpha = egate * pl.reciprocal(denom, approx=True)    # EUP divide
        zg = bmm(Bm, alpha * z)                              # (G, 36) pooled graph feats

        # ------------------------------ decoder ------------------------------
        z1 = bmm(Bt, zg)                                     # z[batch[n]] -> (N, 36)
        z1 = gcn(mm(z1, w(13))) + w(14)                      # GCNConv decoder
        z1_res = relu(z1)
        z1 = z1_res + pe3
        z1 = relu(mm(amm(z1), w(15)) + w(16))                # MPNN decoder 1
        z1 = relu(mm(amm(z1), w(17)) + w(18)) + z1_res       # MPNN decoder 2 + residual
        z1 = relu(mm(amm(z1), w(19)) + w(20))                # MPNN decoder 3 -> (N, 256)
        out_ref[...] = z1

    return kernel


def gnn_forward(x1, x2, pe, edge_index, batch, params, num_graphs):
    """Build dense graph operators + packed weight slabs, then one fused pallas_call."""
    f32, bf16 = jnp.float32, jnp.bfloat16
    N = x1.shape[0]
    G = int(num_graphs)
    src, dst = edge_index[0], edge_index[1]

    (Wec, bec, Wmf, bmf, Wgf, bgf, Wmc, bmc, Wgc, bgc,
     Wa1, ba1, Wa2, ba2, Wgd, bgd, Wmd1, bmd1, Wmd2, bmd2, Wmd3, bmd3) = params

    # MPNN sum aggregation: A[i, j] = #edges j->i  =>  aggr_out = A @ x.
    # bf16 cast is exact while duplicate-edge multiplicity <= 256 (integer counts).
    A_f32 = jnp.zeros((N, N), f32).at[dst, src].add(1.0)
    A = A_f32.astype(bf16)
    # GCNConv D^-1/2 (A+I) D^-1/2 realized in-kernel via row scaling with dis (f32).
    deg = A_f32.sum(axis=1) + 1.0
    dis = jnp.where(deg > 0, jax.lax.rsqrt(deg), 0.0)[:, None]            # (N, 1)

    Bm = (batch[None, :] == jnp.arange(G)[:, None]).astype(bf16)          # (G, N) one-hot
    Bt = Bm.T                                                             # (N, G)

    pe3 = jnp.concatenate([pe, pe, pe], axis=-1).astype(f32)              # (N, 36)
    data = jnp.concatenate([x1.astype(f32), pe3, x2.astype(f32), dis], axis=1)  # (N, 303)

    # Merged-encoder weights (zero-padded / block-diagonal) so the feature and class
    # streams share a single 42-wide A-pass and a single 72-wide normalized A-pass.
    in_ch, comp, hid, out_ch = Wec.shape[1], Wmc.shape[1], Wmf.shape[1], Wgf.shape[1]
    P1 = jnp.concatenate([jnp.eye(in_ch, dtype=f32),
                          jnp.zeros((in_ch, comp), f32)], axis=1)         # (36, 42)
    Wmc_pad = jnp.concatenate([jnp.zeros((Wmc.shape[0], in_ch), f32), Wmc], axis=1)  # (10, 42)
    W_mp = jnp.zeros((in_ch + comp, hid + comp), f32)
    W_mp = W_mp.at[:in_ch, :hid].set(Wmf).at[in_ch:, hid:].set(jnp.eye(comp, dtype=f32))
    b_mp = jnp.concatenate([bmf, bmc], axis=1)                            # (1, 42)
    W_gc = jnp.zeros((hid + comp, 2 * out_ch), f32)
    W_gc = W_gc.at[:hid, :out_ch].set(Wgf).at[hid:, out_ch:].set(Wgc)     # (42, 72)
    b_gc = jnp.concatenate([bgf, bgc], axis=1)                            # (1, 72)
    S = jnp.concatenate([jnp.eye(out_ch, dtype=f32),
                         jnp.eye(out_ch, dtype=f32)], axis=0)             # (72, 36)

    weight_list = [Wec, bec, P1, Wmc_pad, W_mp, b_mp, W_gc, b_gc, S,
                   Wa1, ba1, Wa2, ba2, Wgd, bgd, Wmd1, bmd1, Wmd2, bmd2, Wmd3, bmd3]
    Wslab, segs = _pack_weights(weight_list)

    out_dim = Wmd3.shape[1]   # embed_dim (256)
    inputs = [data, A, Bm, Bt, Wslab]

    # ---- VMEM budget: actual residency (no double-buffering for a gridless call) ----
    io_bytes = sum(int(a.size) * a.dtype.itemsize for a in inputs) + N * out_dim * 4
    work_bytes = 12 * N * 256 * 4 + 4 * G * 64 * 4     # generous live f32 activation budget
    try:
        phys = int(pltpu.get_tpu_info().vmem_capacity_bytes)
    except Exception:                                   # e.g. querying off-device
        phys = 128 << 20
    cap = int(phys * 0.8)                               # ~51 MiB on v7x, ~102 MiB on v5e/v6e
    vmem_limit = int(min(cap, max(32 << 20, io_bytes + work_bytes + (8 << 20))))

    # 6 dense N^2 passes (42 + 72 + 4*36 output lanes) + small per-node linears.
    adj_cols = 42 + 72 + 4 * 36
    flops = (2 * N * N * adj_cols
             + 2 * N * (256 * 36 + 36 * 42 + 10 * 42 + 42 * 42 + 42 * 72 + 72 * 36
                        + 36 * 24 + 24 * 36 + 3 * 36 * 36 + 36 * 256)
             + 8 * N * G * 36)
    cost = pl.CostEstimate(flops=int(flops), transcendentals=int(N * 36),
                           bytes_accessed=int(io_bytes))

    kernel = _make_kernel(segs, x1.shape[1], pe3.shape[1], x2.shape[1])
    return pl.pallas_call(
        kernel,
        out_shape=jax.ShapeDtypeStruct((N, out_dim), f32),
        in_specs=[pl.BlockSpec(memory_space=pltpu.MemorySpace.VMEM)] * len(inputs),
        out_specs=pl.BlockSpec(memory_space=pltpu.MemorySpace.VMEM),
        compiler_params=pltpu.CompilerParams(vmem_limit_bytes=vmem_limit),
        cost_estimate=cost,
    )(*inputs)


def init_params(key):
    """Deterministic Linear params (W: [fan_in, fan_out], b: [1, fan_out])."""
    dims = [
        (256, 36),   # embed_contraction
        (36, 36),    # mpnn_feature.lin
        (36, 36),    # gcn_feature
        (10, 6),     # mpnn_class.lin
        (6, 36),     # gcn_class
        (36, 24),    # attention_nn[0]
        (24, 36),    # attention_nn[2]
        (36, 36),    # gcn_decoder
        (36, 36),    # mpnn_decoder1.lin
        (36, 36),    # mpnn_decoder2.lin
        (36, 256),   # mpnn_decoder3.lin
    ]
    params = []
    for i, (fin, fout) in enumerate(dims):
        kw, kb = jax.random.split(jax.random.fold_in(key, i))
        s = 1.0 / (fin ** 0.5)
        params.append(jax.random.uniform(kw, (fin, fout), jnp.float32, -s, s))
        params.append(jax.random.uniform(kb, (1, fout), jnp.float32, -s, s))
    return params


def gnn_reference(x1, x2, pe, edge_index, batch, params, num_graphs):
    """Independent pure-JAX f32 reference (scatter-based) mirroring the PyTorch model."""
    (Wec, bec, Wmf, bmf, Wgf, bgf, Wmc, bmc, Wgc, bgc,
     Wa1, ba1, Wa2, ba2, Wgd, bgd, Wmd1, bmd1, Wmd2, bmd2, Wmd3, bmd3) = params
    relu = jax.nn.relu
    src, dst = edge_index[0], edge_index[1]
    N = x1.shape[0]

    def mpnn(x, W, b):
        agg = jnp.zeros((N, x.shape[1]), x.dtype).at[dst].add(x[src])
        return agg @ W + b[0]

    src_sl = jnp.concatenate([src, jnp.arange(N)])
    dst_sl = jnp.concatenate([dst, jnp.arange(N)])
    deg = jnp.zeros((N,), jnp.float32).at[dst_sl].add(1.0)
    dis = jnp.where(deg > 0, deg ** -0.5, 0.0)
    norm = dis[src_sl] * dis[dst_sl]

    def gcn(x, W, b):
        xw = x @ W
        out = jnp.zeros((N, W.shape[1]), x.dtype).at[dst_sl].add(norm[:, None] * xw[src_sl])
        return out + b[0]

    pe3 = jnp.concatenate([pe, pe, pe], axis=-1)
    h = x1 @ Wec + bec[0]
    h_res = relu(h)
    h = h_res + pe3
    h = relu(mpnn(h, Wmf, bmf))
    h = relu(gcn(h, Wgf, bgf))
    c = relu(mpnn(x2, Wmc, bmc))
    c = relu(gcn(c, Wgc, bgc))
    z = h + c + h_res
    gate = relu(z @ Wa1 + ba1[0]) @ Wa2 + ba2[0]
    gmax = jnp.full((num_graphs, gate.shape[1]), -jnp.inf).at[batch].max(gate)
    e = jnp.exp(gate - gmax[batch])
    den = jnp.zeros((num_graphs, gate.shape[1])).at[batch].add(e)
    alpha = e / den[batch]
    zg = jnp.zeros((num_graphs, z.shape[1])).at[batch].add(alpha * z)
    z1 = gcn(zg[batch], Wgd, bgd)
    z1_res = relu(z1)
    z1 = z1_res + pe3
    z1 = relu(mpnn(z1, Wmd1, bmd1))
    z1 = relu(mpnn(z1, Wmd2, bmd2)) + z1_res
    z1 = relu(mpnn(z1, Wmd3, bmd3))
    return z1


if __name__ == "__main__":
    key = jax.random.PRNGKey(0)
    N, G, E = 8, 2, 16
    embed_dim, node_classes, pe_dim = 256, 10, 12

    k1, k2, k3, k4, kp = jax.random.split(key, 5)
    x1 = jax.random.normal(k1, (N, embed_dim), jnp.float32)
    x2 = jax.random.normal(k2, (N, node_classes), jnp.float32)
    pe = jax.random.normal(k3, (N, pe_dim), jnp.float32)
    # Random directed edges without self loops.
    src = jax.random.randint(k4, (E,), 0, N)
    off = jax.random.randint(jax.random.fold_in(k4, 1), (E,), 1, N)
    dst = (src + off) % N
    edge_index = jnp.stack([src, dst]).astype(jnp.int32)
    batch = jnp.array([0, 0, 0, 0, 1, 1, 1, 1], jnp.int32)

    params = init_params(kp)

    out = jax.block_until_ready(gnn_forward(x1, x2, pe, edge_index, batch, params, G))
    ref = gnn_reference(x1, x2, pe, edge_index, batch, params, G)

    assert out.shape == (N, embed_dim)
    # bf16 adjacency / one-hot MXU operands (f32 accumulation) + approx reciprocal:
    # compare against the f32 reference with bf16-level tolerance.
    max_err = float(jnp.max(jnp.abs(out - ref)))
    assert jnp.allclose(out, ref, atol=1e-1, rtol=1e-1), max_err
    print("KERNEL_OK")
</pallas_src>

<mosaic_0001>
module attributes {stable_mosaic.version = 11 : i64} {
  func.func @kernel(%arg0: memref<8x303xf32, #tpu.memory_space<vmem>>, %arg1: memref<8x8xbf16, #tpu.memory_space<vmem>>, %arg2: memref<2x8xbf16, #tpu.memory_space<vmem>>, %arg3: memref<8x2xbf16, #tpu.memory_space<vmem>>, %arg4: memref<776x256xf32, #tpu.memory_space<vmem>>, %arg5: memref<8x256xf32, #tpu.memory_space<vmem>>) attributes {dimension_semantics = [], scalar_prefetch = 0 : i64, scratch_operands = 0 : i64, tpu.core_type = #tpu.core_type<tc>} {
    %c0 = arith.constant 0 : index
    %c0_0 = arith.constant 0 : index
    %0 = vector.load %arg0[%c0, %c0_0] : memref<8x303xf32, #tpu.memory_space<vmem>>, vector<8x256xf32>
    %c0_1 = arith.constant 0 : index
    %c256 = arith.constant 256 : index
    %1 = vector.load %arg0[%c0_1, %c256] : memref<8x303xf32, #tpu.memory_space<vmem>>, vector<8x36xf32>
    %c0_2 = arith.constant 0 : index
    %c292 = arith.constant 292 : index
    %2 = vector.load %arg0[%c0_2, %c292] : memref<8x303xf32, #tpu.memory_space<vmem>>, vector<8x10xf32>
    %c0_3 = arith.constant 0 : index
    %c302 = arith.constant 302 : index
    %3 = vector.load %arg0[%c0_3, %c302] : memref<8x303xf32, #tpu.memory_space<vmem>>, vector<8x1xf32>
    %c0_4 = arith.constant 0 : index
    %c0_5 = arith.constant 0 : index
    %4 = vector.load %arg2[%c0_4, %c0_5] : memref<2x8xbf16, #tpu.memory_space<vmem>>, vector<2x8xbf16>
    %c0_6 = arith.constant 0 : index
    %c0_7 = arith.constant 0 : index
    %5 = vector.load %arg3[%c0_6, %c0_7] : memref<8x2xbf16, #tpu.memory_space<vmem>>, vector<8x2xbf16>
    %c0_8 = arith.constant 0 : index
    %c0_9 = arith.constant 0 : index
    %6 = vector.load %arg4[%c0_8, %c0_9] : memref<776x256xf32, #tpu.memory_space<vmem>>, vector<256x36xf32>
    %cst = arith.constant dense<0.000000e+00> : vector<8x36xf32>
    %7 = tpu.matmul %0, %6, %cst {dimension_numbers = #tpu.dot_dimension_numbers<[1], [0], [0], [1], [0, 0, 1, 1], [], []>} : vector<8x256xf32>, vector<256x36xf32>, vector<8x36xf32> -> vector<8x36xf32>
    %c256_10 = arith.constant 256 : index
    %c0_11 = arith.constant 0 : index
    %8 = vector.load %arg4[%c256_10, %c0_11] : memref<776x256xf32, #tpu.memory_space<vmem>>, vector<1x36xf32>
    %9 = vector.broadcast %8 : vector<1x36xf32> to vector<8x36xf32>
    %10 = arith.addf %7, %9 : vector<8x36xf32>
    %cst_12 = arith.constant 0.000000e+00 : f32
    %11 = vector.broadcast %cst_12 : f32 to vector<8x36xf32>
    %12 = arith.maximumf %10, %11 : vector<8x36xf32>
    %13 = arith.addf %12, %1 : vector<8x36xf32>
    %c264 = arith.constant 264 : index
    %c0_13 = arith.constant 0 : index
    %14 = vector.load %arg4[%c264, %c0_13] : memref<776x256xf32, #tpu.memory_space<vmem>>, vector<36x42xf32>
    %cst_14 = arith.constant dense<0.000000e+00> : vector<8x42xf32>
    %15 = tpu.matmul %13, %14, %cst_14 {dimension_numbers = #tpu.dot_dimension_numbers<[1], [0], [0], [1], [0, 0, 1, 1], [], []>} : vector<8x36xf32>, vector<36x42xf32>, vector<8x42xf32> -> vector<8x42xf32>
    %c304 = arith.constant 304 : index
    %c0_15 = arith.constant 0 : index
    %16 = vector.load %arg4[%c304, %c0_15] : memref<776x256xf32, #tpu.memory_space<vmem>>, vector<10x42xf32>
    %cst_16 = arith.constant dense<0.000000e+00> : vector<8x42xf32>
    %17 = tpu.matmul %2, %16, %cst_16 {dimension_numbers = #tpu.dot_dimension_numbers<[1], [0], [0], [1], [0, 0, 1, 1], [], []>} : vector<8x10xf32>, vector<10x42xf32>, vector<8x42xf32> -> vector<8x42xf32>
    %18 = arith.addf %15, %17 : vector<8x42xf32>
    %c0_17 = arith.constant 0 : index
    %c0_18 = arith.constant 0 : index
    %19 = vector.load %arg1[%c0_17, %c0_18] : memref<8x8xbf16, #tpu.memory_space<vmem>>, vector<8x8xbf16>
    %20 = arith.truncf %18 : vector<8x42xf32> to vector<8x42xbf16>
    %cst_19 = arith.constant dense<0.000000e+00> : vector<8x42xf32>
    %21 = tpu.matmul %19, %20, %cst_19 {dimension_numbers = #tpu.dot_dimension_numbers<[1], [0], [0], [1], [0, 0, 1, 1], [], []>} : vector<8x8xbf16>, vector<8x42xbf16>, vector<8x42xf32> -> vector<8x42xf32>
    %c320 = arith.constant 320 : index
    %c0_20 = arith.constant 0 : index
    %22 = vector.load %arg4[%c320, %c0_20] : memref<776x256xf32, #tpu.memory_space<vmem>>, vector<42x42xf32>
    %cst_21 = arith.constant dense<0.000000e+00> : vector<8x42xf32>
    %23 = tpu.matmul %21, %22, %cst_21 {dimension_numbers = #tpu.dot_dimension_numbers<[1], [0], [0], [1], [0, 0, 1, 1], [], []>} : vector<8x42xf32>, vector<42x42xf32>, vector<8x42xf32> -> vector<8x42xf32>
    %c368 = arith.constant 368 : index
    %c0_22 = arith.constant 0 : index
    %24 = vector.load %arg4[%c368, %c0_22] : memref<776x256xf32, #tpu.memory_space<vmem>>, vector<1x42xf32>
    %25 = vector.broadcast %24 : vector<1x42xf32> to vector<8x42xf32>
    %26 = arith.addf %23, %25 : vector<8x42xf32>
    %cst_23 = arith.constant 0.000000e+00 : f32
    %27 = vector.broadcast %cst_23 : f32 to vector<8x42xf32>
    %28 = arith.maximumf %26, %27 : vector<8x42xf32>
    %c376 = arith.constant 376 : index
    %c0_24 = arith.constant 0 : index
    %29 = vector.load %arg4[%c376, %c0_24] : memref<776x256xf32, #tpu.memory_space<vmem>>, vector<42x72xf32>
    %cst_25 = arith.constant dense<0.000000e+00> : vector<8x72xf32>
    %30 = tpu.matmul %28, %29, %cst_25 {dimension_numbers = #tpu.dot_dimension_numbers<[1], [0], [0], [1], [0, 0, 1, 1], [], []>} : vector<8x42xf32>, vector<42x72xf32>, vector<8x72xf32> -> vector<8x72xf32>
    %31 = vector.broadcast %3 : vector<8x1xf32> to vector<8x72xf32>
    %32 = arith.mulf %31, %30 : vector<8x72xf32>
    %c0_26 = arith.constant 0 : index
    %c0_27 = arith.constant 0 : index
    %33 = vector.load %arg1[%c0_26, %c0_27] : memref<8x8xbf16, #tpu.memory_space<vmem>>, vector<8x8xbf16>
    %34 = arith.truncf %32 : vector<8x72xf32> to vector<8x72xbf16>
    %cst_28 = arith.constant dense<0.000000e+00> : vector<8x72xf32>
    %35 = tpu.matmul %33, %34, %cst_28 {dimension_numbers = #tpu.dot_dimension_numbers<[1], [0], [0], [1], [0, 0, 1, 1], [], []>} : vector<8x8xbf16>, vector<8x72xbf16>, vector<8x72xf32> -> vector<8x72xf32>
    %36 = arith.addf %35, %32 : vector<8x72xf32>
    %37 = vector.broadcast %3 : vector<8x1xf32> to vector<8x72xf32>
    %38 = arith.mulf %37, %36 : vector<8x72xf32>
    %c424 = arith.constant 424 : index
    %c0_29 = arith.constant 0 : index
    %39 = vector.load %arg4[%c424, %c0_29] : memref<776x256xf32, #tpu.memory_space<vmem>>, vector<1x72xf32>
    %40 = vector.broadcast %39 : vector<1x72xf32> to vector<8x72xf32>
    %41 = arith.addf %38, %40 : vector<8x72xf32>
    %cst_30 = arith.constant 0.000000e+00 : f32
    %42 = vector.broadcast %cst_30 : f32 to vector<8x72xf32>
    %43 = arith.maximumf %41, %42 : vector<8x72xf32>
    %c432 = arith.constant 432 : index
    %c0_31 = arith.constant 0 : index
    %44 = vector.load %arg4[%c432, %c0_31] : memref<776x256xf32, #tpu.memory_space<vmem>>, vector<72x36xf32>
    %cst_32 = arith.constant dense<0.000000e+00> : vector<8x36xf32>
    %45 = tpu.matmul %43, %44, %cst_32 {dimension_numbers = #tpu.dot_dimension_numbers<[1], [0], [0], [1], [0, 0, 1, 1], [], []>} : vector<8x72xf32>, vector<72x36xf32>, vector<8x36xf32> -> vector<8x36xf32>
    %46 = arith.addf %45, %12 : vector<8x36xf32>
    %c504 = arith.constant 504 : index
    %c0_33 = arith.constant 0 : index
    %47 = vector.load %arg4[%c504, %c0_33] : memref<776x256xf32, #tpu.memory_space<vmem>>, vector<36x24xf32>
    %cst_34 = arith.constant dense<0.000000e+00> : vector<8x24xf32>
    %48 = tpu.matmul %46, %47, %cst_34 {dimension_numbers = #tpu.dot_dimension_numbers<[1], [0], [0], [1], [0, 0, 1, 1], [], []>} : vector<8x36xf32>, vector<36x24xf32>, vector<8x24xf32> -> vector<8x24xf32>
    %c544 = arith.constant 544 : index
    %c0_35 = arith.constant 0 : index
    %49 = vector.load %arg4[%c544, %c0_35] : memref<776x256xf32, #tpu.memory_space<vmem>>, vector<1x24xf32>
    %50 = vector.broadcast %49 : vector<1x24xf32> to vector<8x24xf32>
    %51 = arith.addf %48, %50 : vector<8x24xf32>
    %cst_36 = arith.constant 0.000000e+00 : f32
    %52 = vector.broadcast %cst_36 : f32 to vector<8x24xf32>
    %53 = arith.maximumf %51, %52 : vector<8x24xf32>
    %c552 = arith.constant 552 : index
    %c0_37 = arith.constant 0 : index
    %54 = vector.load %arg4[%c552, %c0_37] : memref<776x256xf32, #tpu.memory_space<vmem>>, vector<24x36xf32>
    %cst_38 = arith.constant dense<0.000000e+00> : vector<8x36xf32>
    %55 = tpu.matmul %53, %54, %cst_38 {dimension_numbers = #tpu.dot_dimension_numbers<[1], [0], [0], [1], [0, 0, 1, 1], [], []>} : vector<8x24xf32>, vector<24x36xf32>, vector<8x36xf32> -> vector<8x36xf32>
    %c576 = arith.constant 576 : index
    %c0_39 = arith.constant 0 : index
    %56 = vector.load %arg4[%c576, %c0_39] : memref<776x256xf32, #tpu.memory_space<vmem>>, vector<1x36xf32>
    %57 = vector.broadcast %56 : vector<1x36xf32> to vector<8x36xf32>
    %58 = arith.addf %55, %57 : vector<8x36xf32>
    %cst_40 = arith.constant dense<0xFF800000> : vector<36xf32>
    %59 = vector.multi_reduction <maximumf>, %58, %cst_40 [0] : vector<8x36xf32> to vector<36xf32>
    %60 = vector.shape_cast %59 : vector<36xf32> to vector<1x36xf32>
    %61 = vector.broadcast %60 : vector<1x36xf32> to vector<8x36xf32>
    %62 = arith.subf %58, %61 : vector<8x36xf32>
    %63 = math.exp %62 : vector<8x36xf32>
    %64 = arith.truncf %63 : vector<8x36xf32> to vector<8x36xbf16>
    %cst_41 = arith.constant dense<0.000000e+00> : vector<2x36xf32>
    %65 = tpu.matmul %4, %64, %cst_41 {dimension_numbers = #tpu.dot_dimension_numbers<[1], [0], [0], [1], [0, 0, 1, 1], [], []>} : vector<2x8xbf16>, vector<8x36xbf16>, vector<2x36xf32> -> vector<2x36xf32>
    %66 = arith.truncf %65 : vector<2x36xf32> to vector<2x36xbf16>
    %cst_42 = arith.constant dense<0.000000e+00> : vector<8x36xf32>
    %67 = tpu.matmul %5, %66, %cst_42 {dimension_numbers = #tpu.dot_dimension_numbers<[1], [0], [0], [1], [0, 0, 1, 1], [], []>} : vector<8x2xbf16>, vector<2x36xbf16>, vector<8x36xf32> -> vector<8x36xf32>
    %68 = tpu.reciprocal %67 {approx = true} : vector<8x36xf32> -> vector<8x36xf32>
    %69 = arith.mulf %63, %68 : vector<8x36xf32>
    %70 = arith.mulf %69, %46 : vector<8x36xf32>
    %71 = arith.truncf %70 : vector<8x36xf32> to vector<8x36xbf16>
    %cst_43 = arith.constant dense<0.000000e+00> : vector<2x36xf32>
    %72 = tpu.matmul %4, %71, %cst_43 {dimension_numbers = #tpu.dot_dimension_numbers<[1], [0], [0], [1], [0, 0, 1, 1], [], []>} : vector<2x8xbf16>, vector<8x36xbf16>, vector<2x36xf32> -> vector<2x36xf32>
    %73 = arith.truncf %72 : vector<2x36xf32> to vector<2x36xbf16>
    %cst_44 = arith.constant dense<0.000000e+00> : vector<8x36xf32>
    %74 = tpu.matmul %5, %73, %cst_44 {dimension_numbers = #tpu.dot_dimension_numbers<[1], [0], [0], [1], [0, 0, 1, 1], [], []>} : vector<8x2xbf16>, vector<2x36xbf16>, vector<8x36xf32> -> vector<8x36xf32>
    %c584 = arith.constant 584 : index
    %c0_45 = arith.constant 0 : index
    %75 = vector.load %arg4[%c584, %c0_45] : memref<776x256xf32, #tpu.memory_space<vmem>>, vector<36x36xf32>
    %cst_46 = arith.constant dense<0.000000e+00> : vector<8x36xf32>
    %76 = tpu.matmul %74, %75, %cst_46 {dimension_numbers = #tpu.dot_dimension_numbers<[1], [0], [0], [1], [0, 0, 1, 1], [], []>} : vector<8x36xf32>, vector<36x36xf32>, vector<8x36xf32> -> vector<8x36xf32>
    %77 = vector.broadcast %3 : vector<8x1xf32> to vector<8x36xf32>
    %78 = arith.mulf %77, %76 : vector<8x36xf32>
    %c0_47 = arith.constant 0 : index
    %c0_48 = arith.constant 0 : index
    %79 = vector.load %arg1[%c0_47, %c0_48] : memref<8x8xbf16, #tpu.memory_space<vmem>>, vector<8x8xbf16>
    %80 = arith.truncf %78 : vector<8x36xf32> to vector<8x36xbf16>
    %cst_49 = arith.constant dense<0.000000e+00> : vector<8x36xf32>
    %81 = tpu.matmul %79, %80, %cst_49 {dimension_numbers = #tpu.dot_dimension_numbers<[1], [0], [0], [1], [0, 0, 1, 1], [], []>} : vector<8x8xbf16>, vector<8x36xbf16>, vector<8x36xf32> -> vector<8x36xf32>
    %82 = arith.addf %81, %78 : vector<8x36xf32>
    %83 = vector.broadcast %3 : vector<8x1xf32> to vector<8x36xf32>
    %84 = arith.mulf %83, %82 : vector<8x36xf32>
    %c624 = arith.constant 624 : index
    %c0_50 = arith.constant 0 : index
    %85 = vector.load %arg4[%c624, %c0_50] : memref<776x256xf32, #tpu.memory_space<vmem>>, vector<1x36xf32>
    %86 = vector.broadcast %85 : vector<1x36xf32> to vector<8x36xf32>
    %87 = arith.addf %84, %86 : vector<8x36xf32>
    %cst_51 = arith.constant 0.000000e+00 : f32
    %88 = vector.broadcast %cst_51 : f32 to vector<8x36xf32>
    %89 = arith.maximumf %87, %88 : vector<8x36xf32>
    %90 = arith.addf %89, %1 : vector<8x36xf32>
    %c0_52 = arith.constant 0 : index
    %c0_53 = arith.constant 0 : index
    %91 = vector.load %arg1[%c0_52, %c0_53] : memref<8x8xbf16, #tpu.memory_space<vmem>>, vector<8x8xbf16>
    %92 = arith.truncf %90 : vector<8x36xf32> to vector<8x36xbf16>
    %cst_54 = arith.constant dense<0.000000e+00> : vector<8x36xf32>
    %93 = tpu.matmul %91, %92, %cst_54 {dimension_numbers = #tpu.dot_dimension_numbers<[1], [0], [0], [1], [0, 0, 1, 1], [], []>} : vector<8x8xbf16>, vector<8x36xbf16>, vector<8x36xf32> -> vector<8x36xf32>
    %c632 = arith.constant 632 : index
    %c0_55 = arith.constant 0 : index
    %94 = vector.load %arg4[%c632, %c0_55] : memref<776x256xf32, #tpu.memory_space<vmem>>, vector<36x36xf32>
    %cst_56 = arith.constant dense<0.000000e+00> : vector<8x36xf32>
    %95 = tpu.matmul %93, %94, %cst_56 {dimension_numbers = #tpu.dot_dimension_numbers<[1], [0], [0], [1], [0, 0, 1, 1], [], []>} : vector<8x36xf32>, vector<36x36xf32>, vector<8x36xf32> -> vector<8x36xf32>
    %c672 = arith.constant 672 : index
    %c0_57 = arith.constant 0 : index
    %96 = vector.load %arg4[%c672, %c0_57] : memref<776x256xf32, #tpu.memory_space<vmem>>, vector<1x36xf32>
    %97 = vector.broadcast %96 : vector<1x36xf32> to vector<8x36xf32>
    %98 = arith.addf %95, %97 : vector<8x36xf32>
    %cst_58 = arith.constant 0.000000e+00 : f32
    %99 = vector.broadcast %cst_58 : f32 to vector<8x36xf32>
    %100 = arith.maximumf %98, %99 : vector<8x36xf32>
    %c0_59 = arith.constant 0 : index
    %c0_60 = arith.constant 0 : index
    %101 = vector.load %arg1[%c0_59, %c0_60] : memref<8x8xbf16, #tpu.memory_space<vmem>>, vector<8x8xbf16>
    %102 = arith.truncf %100 : vector<8x36xf32> to vector<8x36xbf16>
    %cst_61 = arith.constant dense<0.000000e+00> : vector<8x36xf32>
    %103 = tpu.matmul %101, %102, %cst_61 {dimension_numbers = #tpu.dot_dimension_numbers<[1], [0], [0], [1], [0, 0, 1, 1], [], []>} : vector<8x8xbf16>, vector<8x36xbf16>, vector<8x36xf32> -> vector<8x36xf32>
    %c680 = arith.constant 680 : index
    %c0_62 = arith.constant 0 : index
    %104 = vector.load %arg4[%c680, %c0_62] : memref<776x256xf32, #tpu.memory_space<vmem>>, vector<36x36xf32>
    %cst_63 = arith.constant dense<0.000000e+00> : vector<8x36xf32>
    %105 = tpu.matmul %103, %104, %cst_63 {dimension_numbers = #tpu.dot_dimension_numbers<[1], [0], [0], [1], [0, 0, 1, 1], [], []>} : vector<8x36xf32>, vector<36x36xf32>, vector<8x36xf32> -> vector<8x36xf32>
    %c720 = arith.constant 720 : index
    %c0_64 = arith.constant 0 : index
    %106 = vector.load %arg4[%c720, %c0_64] : memref<776x256xf32, #tpu.memory_space<vmem>>, vector<1x36xf32>
    %107 = vector.broadcast %106 : vector<1x36xf32> to vector<8x36xf32>
    %108 = arith.addf %105, %107 : vector<8x36xf32>
    %cst_65 = arith.constant 0.000000e+00 : f32
    %109 = vector.broadcast %cst_65 : f32 to vector<8x36xf32>
    %110 = arith.maximumf %108, %109 : vector<8x36xf32>
    %111 = arith.addf %110, %89 : vector<8x36xf32>
    %c0_66 = arith.constant 0 : index
    %c0_67 = arith.constant 0 : index
    %112 = vector.load %arg1[%c0_66, %c0_67] : memref<8x8xbf16, #tpu.memory_space<vmem>>, vector<8x8xbf16>
    %113 = arith.truncf %111 : vector<8x36xf32> to vector<8x36xbf16>
    %cst_68 = arith.constant dense<0.000000e+00> : vector<8x36xf32>
    %114 = tpu.matmul %112, %113, %cst_68 {dimension_numbers = #tpu.dot_dimension_numbers<[1], [0], [0], [1], [0, 0, 1, 1], [], []>} : vector<8x8xbf16>, vector<8x36xbf16>, vector<8x36xf32> -> vector<8x36xf32>
    %c728 = arith.constant 728 : index
    %c0_69 = arith.constant 0 : index
    %115 = vector.load %arg4[%c728, %c0_69] : memref<776x256xf32, #tpu.memory_space<vmem>>, vector<36x256xf32>
    %cst_70 = arith.constant dense<0.000000e+00> : vector<8x256xf32>
    %116 = tpu.matmul %114, %115, %cst_70 {dimension_numbers = #tpu.dot_dimension_numbers<[1], [0], [0], [1], [0, 0, 1, 1], [], []>} : vector<8x36xf32>, vector<36x256xf32>, vector<8x256xf32> -> vector<8x256xf32>
    %c768 = arith.constant 768 : index
    %c0_71 = arith.constant 0 : index
    %117 = vector.load %arg4[%c768, %c0_71] : memref<776x256xf32, #tpu.memory_space<vmem>>, vector<1x256xf32>
    %118 = vector.broadcast %117 : vector<1x256xf32> to vector<8x256xf32>
    %119 = arith.addf %116, %118 : vector<8x256xf32>
    %cst_72 = arith.constant 0.000000e+00 : f32
    %120 = vector.broadcast %cst_72 : f32 to vector<8x256xf32>
    %121 = arith.maximumf %119, %120 : vector<8x256xf32>
    %c0_73 = arith.constant 0 : index
    %c0_74 = arith.constant 0 : index
    %122 = vector.load %arg5[%c0_73, %c0_74] : memref<8x256xf32, #tpu.memory_space<vmem>>, vector<8x256xf32>
    tpu.vector_store %arg5[%c0_73, %c0_74], %121 {strides = array<i32>} : memref<8x256xf32, #tpu.memory_space<vmem>>, vector<8x256xf32>,
    return
  }
}

</mosaic_0001>

<llo_original>
// kernel: tpu_custom_call.1
$region0: #{tpu_custom_call.1}
  #allocation0 [shape = 'u32[]', space=smem, size = 0x4, offset = 0x4, fixed_abs, tag = 'smem constant byte address 0x4 - core index']
  #allocation1 [shape = 'u32[144,128]{1,0:T(1,128)}', space=vmem, size = 0x12000, scoped, tag = 'internal scratch']
  %s0 = inlined_call_operand.hbm [shape: f32[8,303], index: 0, kind: input, shape index: {}]
  %s1 = inlined_call_operand.vmem [shape: bf16[8,8], index: 1, kind: input, shape index: {}]
  %s2 = inlined_call_operand.vmem [shape: bf16[2,8], index: 2, kind: input, shape index: {}]
  %s3 = inlined_call_operand.vmem [shape: bf16[8,2], index: 3, kind: input, shape index: {}]
  %s4 = inlined_call_operand.hbm [shape: f32[776,256], index: 4, kind: input, shape index: {}]
  %s5 = inlined_call_operand.hbm [shape: f32[8,256], index: 5, kind: output, shape index: {}]
  %s6 = sld [smem:[#allocation0]]
  $region38: #{tpu_custom_call.1} parent=0
    _
  %s8 = ssub.s32 1, %s6
  %s9 = scalar_select 0, %s8, %s6
  $region1: #{tpu_custom_call.1} parent=0
    #allocation2 [shape = 'u8[12288]{0}', space=vmem, size = 0x3000, scoped, tag = 'input window, operand 0, single buffered']
    #allocation3 [shape = 's32[1]{0}', space=sflag, size = 0x4, scoped, tag = 'scoped memory for tpu_custom_call.1']
    #allocation4 [shape = 's32[1]{0}', space=sflag, size = 0x4, scoped, tag = 'scoped memory for tpu_custom_call.1']
    #allocation5 [shape = 'u8[794624]{0}', space=vmem, size = 0xc2000, scoped, tag = 'input window, operand 4, single buffered']
    #allocation6 [shape = 's32[1]{0}', space=sflag, size = 0x4, scoped, tag = 'scoped memory for tpu_custom_call.1']
    #allocation7 [shape = 'u8[8192]{0}', space=vmem, size = 0x2000, scoped, tag = 'output window, operand 0, single buffered']
    %10 = vsyncpa [#allocation3], 0
    %11 = vsyncpa [#allocation6], 0
    %12 = vsyncpa [#allocation4], 0
    // Predicated region
    $region2: #{tpu_custom_call.1} parent=1 // pred_check
      _
    $region3: #{tpu_custom_call.1} parent=1 // pred_check_branch
      %14 = sbr.rel (0) target = $region5
    $region4: #{tpu_custom_call.1} parent=1 // pred_region
      %s16 = ssub.s32 384, 384
      %17 = vsyncadd [#allocation3], %s16
      %s19 = sshll.u32 [#allocation2], 4
      %s20 = int_to_ptr.vmem [resolvable:$true] %s19
      %22 = dma.hbm_to_vmem [thread:$0]  %s0, 384, %s20, [#allocation3]
    $region5: #{tpu_custom_call.1} parent=1 // pred_fallthru
      _
    // Predicated region
    $region6: #{tpu_custom_call.1} parent=1 // pred_check
      _
    $region7: #{tpu_custom_call.1} parent=1 // pred_check_branch
      %24 = sbr.rel (0) target = $region9
    $region8: #{tpu_custom_call.1} parent=1 // pred_region
      _
    $region9: #{tpu_custom_call.1} parent=1 // pred_fallthru
      _
    // Predicated region
    $region10: #{tpu_custom_call.1} parent=1 // pred_check
      _
    $region11: #{tpu_custom_call.1} parent=1 // pred_check_branch
      %26 = sbr.rel (0) target = $region13
    $region12: #{tpu_custom_call.1} parent=1 // pred_region
      _
    $region13: #{tpu_custom_call.1} parent=1 // pred_fallthru
      _
    // Predicated region
    $region14: #{tpu_custom_call.1} parent=1 // pred_check
      _
    $region15: #{tpu_custom_call.1} parent=1 // pred_check_branch
      %28 = sbr.rel (0) target = $region17
    $region16: #{tpu_custom_call.1} parent=1 // pred_region
      _
    $region17: #{tpu_custom_call.1} parent=1 // pred_fallthru
      _
    // Predicated region
    $region18: #{tpu_custom_call.1} parent=1 // pred_check
      _
    $region19: #{tpu_custom_call.1} parent=1 // pred_check_branch
      %30 = sbr.rel (0) target = $region21
    $region20: #{tpu_custom_call.1} parent=1 // pred_region
      %s32 = ssub.s32 24832, 24832
      %33 = vsyncadd [#allocation6], %s32
      %s34 = sshll.u32 [#allocation5], 4
      %s35 = int_to_ptr.vmem [resolvable:$true] %s34
      %40 = dma.hbm_to_vmem [thread:$0]  %s4, 24832, %s35, [#allocation6], 256, 256, 16
    $region21: #{tpu_custom_call.1} parent=1 // pred_fallthru
      _
    // Predicated region
    $region22: #{tpu_custom_call.1} parent=1 // pred_check
      _
    $region23: #{tpu_custom_call.1} parent=1 // pred_check_branch
      %42 = sbr.rel (0) target = $region25
    $region24: #{tpu_custom_call.1} parent=1 // pred_region
      %43 = dma.done [#allocation3], 384
    $region25: #{tpu_custom_call.1} parent=1 // pred_fallthru
      _
    // Predicated region
    $region26: #{tpu_custom_call.1} parent=1 // pred_check
      _
    $region27: #{tpu_custom_call.1} parent=1 // pred_check_branch
      %45 = sbr.rel (0) target = $region29
    $region28: #{tpu_custom_call.1} parent=1 // pred_region
      %46 = dma.done [#allocation6], 24832
    $region29: #{tpu_custom_call.1} parent=1 // pred_fallthru
      _
    %v48 = vld [vmem:[#allocation2] sm:$0xff]
    %v49 = vld [vmem:[#allocation2 + $0x8] sm:$0xff]
    %v50 = vld [vmem:[#allocation2 + $0x10] sm:$0xff]
    %v51 = vld [vmem:[%s2] sm:$0x1]
    %v52 = vld [vmem:[%s3] sm:$0xf]
    %v53 = vld [vmem:[#allocation5] sm:$0xff]
    %v54 = vld [vmem:[#allocation5 + $0x10] sm:$0xff]
    %v55 = vld [vmem:[#allocation5 + $0x20] sm:$0xff]
    %v56 = vld [vmem:[#allocation5 + $0x30] sm:$0xff]
    %v57 = vld [vmem:[#allocation5 + $0x40] sm:$0xff]
    %v58 = vld [vmem:[#allocation5 + $0x50] sm:$0xff]
    %v59 = vld [vmem:[#allocation5 + $0x60] sm:$0xff]
    %v60 = vld [vmem:[#allocation5 + $0x70] sm:$0xff]
    %v61 = vld [vmem:[#allocation5 + $0x80] sm:$0xff]
    %v62 = vld [vmem:[#allocation5 + $0x90] sm:$0xff]
    %v63 = vld [vmem:[#allocation5 + $0xa0] sm:$0xff]
    %v64 = vld [vmem:[#allocation5 + $0xb0] sm:$0xff]
    %v65 = vld [vmem:[#allocation5 + $0xc0] sm:$0xff]
    %v66 = vld [vmem:[#allocation5 + $0xd0] sm:$0xff]
    %v67 = vld [vmem:[#allocation5 + $0xe0] sm:$0xff]
    %v68 = vld [vmem:[#allocation5 + $0xf0] sm:$0xff]
    %v69 = vld [vmem:[#allocation5 + $0x100] sm:$0xff]
    %v70 = vld [vmem:[#allocation5 + $0x110] sm:$0xff]
    %v71 = vld [vmem:[#allocation5 + $0x120] sm:$0xff]
    %v72 = vld [vmem:[#allocation5 + $0x130] sm:$0xff]
    %v73 = vld [vmem:[#allocation5 + $0x140] sm:$0xff]
    %v74 = vld [vmem:[#allocation5 + $0x150] sm:$0xff]
    %v75 = vld [vmem:[#allocation5 + $0x160] sm:$0xff]
    %v76 = vld [vmem:[#allocation5 + $0x170] sm:$0xff]
    %v77 = vld [vmem:[#allocation5 + $0x180] sm:$0xff]
    %v78 = vld [vmem:[#allocation5 + $0x190] sm:$0xff]
    %v79 = vld [vmem:[#allocation5 + $0x1a0] sm:$0xff]
    %v80 = vld [vmem:[#allocation5 + $0x1b0] sm:$0xff]
    %v81 = vld [vmem:[#allocation5 + $0x1c0] sm:$0xff]
    %v82 = vld [vmem:[#allocation5 + $0x1d0] sm:$0xff]
    %v83 = vld [vmem:[#allocation5 + $0x1e0] sm:$0xff]
    %v84 = vld [vmem:[#allocation5 + $0x1f0] sm:$0xff]
    %v85 = vld [vmem:[#allocation5 + $0x200] ss:$0 sm:$0xff]
    %86 = vmatprep.subr.mxu0 0.0
    %87 = vmatpush1.msra.mxu0 %v53
    %88 = vmatprep.subr.mxu0 0.0
    %89 = vmatpush1.msra.mxu0 %v54
    %90 = vmatprep.subr.mxu0 0.0
    %91 = vmatpush1.msra.mxu0 %v55
    %92 = vmatprep.subr.mxu0 0.0
    %93 = vmatpush1.msra.mxu0 %v56
    %94 = vmatprep.subr.mxu0 0.0
    %95 = vmatpush1.msra.mxu0 %v57
    %96 = vmatprep.subr.mxu0 0.0
    %97 = vmatpush1.msra.mxu0 %v58
    %98 = vmatprep.subr.mxu0 0.0
    %99 = vmatpush1.msra.mxu0 %v59
    %100 = vmatprep.subr.mxu0 0.0
    %101 = vmatpush1.msra.mxu0 %v60
    %102 = vmatprep.subr.mxu0 0.0
    %103 = vmatpush1.msra.mxu0 %v61
    %104 = vmatprep.subr.mxu0 0.0
    %105 = vmatpush1.msra.mxu0 %v62
    %106 = vmatprep.subr.mxu0 0.0
    %107 = vmatpush1.msra.mxu0 %v63
    %108 = vmatprep.subr.mxu0 0.0
    %109 = vmatpush1.msra.mxu0 %v64
    %110 = vmatprep.subr.mxu0 0.0
    %111 = vmatpush1.msra.mxu0 %v65
    %112 = vmatprep.subr.mxu0 0.0
    %113 = vmatpush1.msra.mxu0 %v66
    %114 = vmatprep.subr.mxu0 0.0
    %115 = vmatpush1.msra.mxu0 %v67
    %116 = vmatprep.subr.mxu0 0.0
    %117 = vmatpush1.msra.mxu0 %v68
    %118 = vmatprep.subr.mxu0 0.0
    %119 = vmatpush1.msra.mxu0 %v69
    %120 = vmatprep.subr.mxu0 0.0
    %121 = vmatpush1.msra.mxu0 %v70
    %122 = vmatprep.subr.mxu0 0.0
    %123 = vmatpush1.msra.mxu0 %v71
    %124 = vmatprep.subr.mxu0 0.0
    %125 = vmatpush1.msra.mxu0 %v72
    %126 = vmatprep.subr.mxu0 0.0
    %127 = vmatpush1.msra.mxu0 %v73
    %128 = vmatprep.subr.mxu0 0.0
    %129 = vmatpush1.msra.mxu0 %v74
    %130 = vmatprep.subr.mxu0 0.0
    %131 = vmatpush1.msra.mxu0 %v75
    %132 = vmatprep.subr.mxu0 0.0
    %133 = vmatpush1.msra.mxu0 %v76
    %134 = vmatprep.subr.mxu0 0.0
    %135 = vmatpush1.msra.mxu0 %v77
    %136 = vmatprep.subr.mxu0 0.0
    %137 = vmatpush1.msra.mxu0 %v78
    %138 = vmatprep.subr.mxu0 0.0
    %139 = vmatpush1.msra.mxu0 %v79
    %140 = vmatprep.subr.mxu0 0.0
    %141 = vmatpush1.msra.mxu0 %v80
    %142 = vmatprep.subr.mxu0 0.0
    %143 = vmatpush1.msra.mxu0 %v81
    %144 = vmatprep.subr.mxu0 0.0
    %145 = vmatpush1.msra.mxu0 %v82
    %146 = vmatprep.subr.mxu0 0.0
    %147 = vmatpush1.msra.mxu0 %v83
    %148 = vmatprep.subr.mxu0 0.0
    %149 = vmatpush1.msra.mxu0 %v84
    %150 = vmatprep.mubr.f32.mxu0 %v49
    %151 = vmatmul.mubr.f32.gmra.mrb[0].mxu0 %v48
    %v152 = vpop.f32.mrb[0].mxu0
    %v153 = vadd.f32 %v85, %v152
    %v154 = vpop.f32.mrb[0].mxu0
    %155 = vdwg.mxu0
    %v156 = vmax.f32 %v153, 0.0
    %v157 = vadd.f32 %v156, %v50
    %v158 = vld [vmem:[#allocation5 + $0x210] sm:$0xff]
    %v159 = vld [vmem:[#allocation5 + $0x220] sm:$0xff]
    %v160 = vld [vmem:[#allocation5 + $0x230] sm:$0xff]
    %v161 = vld [vmem:[#allocation5 + $0x240] sm:$0xff]
    %v162 = vld [vmem:[#allocation5 + $0x250] sm:$0xf]
    %v163 = vld [vmem:[#allocation5 + $0x260] sm:$0xff]
    %v164 = vld [vmem:[#allocation5 + $0x270] sm:$0x3]
    %166 = vrot.lane.b32.xlu0 %v50, 92
    %v167 = vpop.permute.xlu0 %166
    %vm168 = vcmask 80896
    %v169 = vsel %vm168, %v167, 0
    %vm171 = vcmask 1041408
    %v173 = vsel %vm171, %v164, 0
    %175 = vmatprep.subr.mxu0 0.0
    %176 = vmatpush1.msra.mxu0 %v163
    %177 = vmatprep.subr.mxu0 0.0
    %178 = vmatpush1.msra.mxu0 %v173
    %179 = vmatprep.subr.mxu0 0.0
    %180 = vmatpush1.msra.mxu0 0.0
    %181 = vmatprep.subr.mxu0 0.0
    %182 = vmatpush1.msra.mxu0 0.0
    %183 = vmatprep.subr.mxu0 0.0
    %184 = vmatpush1.msra.mxu0 0.0
    %185 = vmatprep.subr.mxu0 0.0
    %186 = vmatpush1.msra.mxu0 0.0
    %187 = vmatprep.subr.mxu0 0.0
    %188 = vmatpush1.msra.mxu0 0.0
    %189 = vmatprep.subr.mxu0 0.0
    %190 = vmatpush1.msra.mxu0 0.0
    %191 = vmatprep.subr.mxu0 0.0
    %192 = vmatpush1.msra.mxu0 0.0
    %193 = vmatprep.subr.mxu0 0.0
    %194 = vmatpush1.msra.mxu0 0.0
    %195 = vmatprep.subr.mxu0 0.0
    %196 = vmatpush1.msra.mxu0 0.0
    %197 = vmatprep.subr.mxu0 0.0
    %198 = vmatpush1.msra.mxu0 0.0
    %199 = vmatprep.subr.mxu0 0.0
    %200 = vmatpush1.msra.mxu0 0.0
    %201 = vmatprep.subr.mxu0 0.0
    %202 = vmatpush1.msra.mxu0 0.0
    %203 = vmatprep.subr.mxu0 0.0
    %204 = vmatpush1.msra.mxu0 0.0
    %205 = vmatprep.subr.mxu0 0.0
    %206 = vmatpush1.msra.mxu0 0.0
    %207 = vmatprep.subr.mxu0 0.0
    %208 = vmatpush1.msra.mxu0 0.0
    %209 = vmatprep.subr.mxu0 0.0
    %210 = vmatpush1.msra.mxu0 0.0
    %211 = vmatprep.subr.mxu0 0.0
    %212 = vmatpush1.msra.mxu0 0.0
    %213 = vmatprep.subr.mxu0 0.0
    %214 = vmatpush1.msra.mxu0 0.0
    %215 = vmatprep.subr.mxu0 0.0
    %216 = vmatpush1.msra.mxu0 0.0
    %217 = vmatprep.subr.mxu0 0.0
    %218 = vmatpush1.msra.mxu0 0.0
    %219 = vmatprep.subr.mxu0 0.0
    %220 = vmatpush1.msra.mxu0 0.0
    %221 = vmatprep.subr.mxu0 0.0
    %222 = vmatpush1.msra.mxu0 0.0
    %223 = vmatprep.subr.mxu0 0.0
    %224 = vmatpush1.msra.mxu0 0.0
    %225 = vmatprep.subr.mxu0 0.0
    %226 = vmatpush1.msra.mxu0 0.0
    %227 = vmatprep.subr.mxu0 0.0
    %228 = vmatpush1.msra.mxu0 0.0
    %229 = vmatprep.subr.mxu0 0.0
    %230 = vmatpush1.msra.mxu0 0.0
    %231 = vmatprep.subr.mxu0 0.0
    %232 = vmatpush1.msra.mxu0 0.0
    %233 = vmatprep.subr.mxu0 0.0
    %234 = vmatpush1.msra.mxu0 0.0
    %235 = vmatprep.subr.mxu0 0.0
    %236 = vmatpush1.msra.mxu0 0.0
    %237 = vmatprep.subr.mxu0 0.0
    %238 = vmatpush1.msra.mxu0 0.0
    %239 = vmatprep.mubr.f32.mxu0 0.0
    %240 = vmatmul.mubr.f32.gmra.mrb[0].mxu0 %v169
    %v241 = vpop.f32.mrb[0].mxu0
    %v242 = vadd.f32 0.0, %v241
    %v243 = vpop.f32.mrb[0].mxu0
    %244 = vdwg.mxu0
    %vm245 = vcmask 293888
    %v247 = vsel %vm245, %v157, 0
    %vm249 = vcmask 1043456
    %v251 = vsel %vm249, %v162, 0
    %253 = vmatprep.subr.mxu0 0.0
    %254 = vmatpush1.msra.mxu0 %v158
    %255 = vmatprep.subr.mxu0 0.0
    %256 = vmatpush1.msra.mxu0 %v159
    %257 = vmatprep.subr.mxu0 0.0
    %258 = vmatpush1.msra.mxu0 %v160
    %259 = vmatprep.subr.mxu0 0.0
    %260 = vmatpush1.msra.mxu0 %v161
    %261 = vmatprep.subr.mxu0 0.0
    %262 = vmatpush1.msra.mxu0 %v251
    %263 = vmatprep.subr.mxu0 0.0
    %264 = vmatpush1.msra.mxu0 0.0
    %265 = vmatprep.subr.mxu0 0.0
    %266 = vmatpush1.msra.mxu0 0.0
    %267 = vmatprep.subr.mxu0 0.0
    %268 = vmatpush1.msra.mxu0 0.0
    %269 = vmatprep.subr.mxu0 0.0
    %270 = vmatpush1.msra.mxu0 0.0
    %271 = vmatprep.subr.mxu0 0.0
    %272 = vmatpush1.msra.mxu0 0.0
    %273 = vmatprep.subr.mxu0 0.0
    %274 = vmatpush1.msra.mxu0 0.0
    %275 = vmatprep.subr.mxu0 0.0
    %276 = vmatpush1.msra.mxu0 0.0
    %277 = vmatprep.subr.mxu0 0.0
    %278 = vmatpush1.msra.mxu0 0.0
    %279 = vmatprep.subr.mxu0 0.0
    %280 = vmatpush1.msra.mxu0 0.0
    %281 = vmatprep.subr.mxu0 0.0
    %282 = vmatpush1.msra.mxu0 0.0
    %283 = vmatprep.subr.mxu0 0.0
    %284 = vmatpush1.msra.mxu0 0.0
    %285 = vmatprep.subr.mxu0 0.0
    %286 = vmatpush1.msra.mxu0 0.0
    %287 = vmatprep.subr.mxu0 0.0
    %288 = vmatpush1.msra.mxu0 0.0
    %289 = vmatprep.subr.mxu0 0.0
    %290 = vmatpush1.msra.mxu0 0.0
    %291 = vmatprep.subr.mxu0 0.0
    %292 = vmatpush1.msra.mxu0 0.0
    %293 = vmatprep.subr.mxu0 0.0
    %294 = vmatpush1.msra.mxu0 0.0
    %295 = vmatprep.subr.mxu0 0.0
    %296 = vmatpush1.msra.mxu0 0.0
    %297 = vmatprep.subr.mxu0 0.0
    %298 = vmatpush1.msra.mxu0 0.0
    %299 = vmatprep.subr.mxu0 0.0
    %300 = vmatpush1.msra.mxu0 0.0
    %301 = vmatprep.subr.mxu0 0.0
    %302 = vmatpush1.msra.mxu0 0.0
    %303 = vmatprep.subr.mxu0 0.0
    %304 = vmatpush1.msra.mxu0 0.0
    %305 = vmatprep.subr.mxu0 0.0
    %306 = vmatpush1.msra.mxu0 0.0
    %307 = vmatprep.subr.mxu0 0.0
    %308 = vmatpush1.msra.mxu0 0.0
    %309 = vmatprep.subr.mxu0 0.0
    %310 = vmatpush1.msra.mxu0 0.0
    %311 = vmatprep.subr.mxu0 0.0
    %312 = vmatpush1.msra.mxu0 0.0
    %313 = vmatprep.subr.mxu0 0.0
    %314 = vmatpush1.msra.mxu0 0.0
    %315 = vmatprep.subr.mxu0 0.0
    %316 = vmatpush1.msra.mxu0 0.0
    %317 = vmatprep.mubr.f32.mxu0 0.0
    %318 = vmatmul.mubr.f32.gmra.mrb[0].mxu0 %v247
    %v319 = vpop.f32.mrb[0].mxu0
    %v320 = vadd.f32 %v242, %v319
    %v321 = vpop.f32.mrb[0].mxu0
    %322 = vdwg.mxu0
    %v323 = vld [vmem:[%s1] sm:$0xf]
    %v324 = vpack.c.bf16 %v320, %v320
    %vm325 = vcmask 64512
    %v327 = vsel %vm325, %v323, 0
    %v330 = vsel %vm249, %v324, 0
    %332 = vmatprep.subr.bf16.mxu0 0
    %333 = vmatpush1.bf16.msra.mxu0 %v330
    %334 = vmatprep.subr.bf16.mxu0 0
    %335 = vmatpush1.bf16.msra.mxu0 0
    %336 = vmatprep.subr.bf16.mxu0 0
    %337 = vmatpush1.bf16.msra.mxu0 0
    %338 = vmatprep.subr.bf16.mxu0 0
    %339 = vmatpush1.bf16.msra.mxu0 0
    %340 = vmatprep.subr.bf16.mxu0 0
    %341 = vmatpush1.bf16.msra.mxu0 0
    %342 = vmatprep.subr.bf16.mxu0 0
    %343 = vmatpush1.bf16.msra.mxu0 0
    %344 = vmatprep.subr.bf16.mxu0 0
    %345 = vmatpush1.bf16.msra.mxu0 0
    %346 = vmatprep.subr.bf16.mxu0 0
    %347 = vmatpush1.bf16.msra.mxu0 0
    %348 = vmatprep.subr.bf16.mxu0 0
    %349 = vmatpush1.bf16.msra.mxu0 0
    %350 = vmatprep.subr.bf16.mxu0 0
    %351 = vmatpush1.bf16.msra.mxu0 0
    %352 = vmatprep.subr.bf16.mxu0 0
    %353 = vmatpush1.bf16.msra.mxu0 0
    %354 = vmatprep.subr.bf16.mxu0 0
    %355 = vmatpush1.bf16.msra.mxu0 0
    %356 = vmatprep.subr.bf16.mxu0 0
    %357 = vmatpush1.bf16.msra.mxu0 0
    %358 = vmatprep.subr.bf16.mxu0 0
    %359 = vmatpush1.bf16.msra.mxu0 0
    %360 = vmatprep.subr.bf16.mxu0 0
    %361 = vmatpush1.bf16.msra.mxu0 0
    %362 = vmatprep.subr.bf16.mxu0 0
    %363 = vmatpush1.bf16.msra.mxu0 0
    %364 = vmatprep.mubr.bf16.mxu0 0
    %365 = vmatmul.mubr.bf16.gmra.mrb[0].mxu0 %v327
    %v366 = vpop.f32.mrb[0].mxu0
    %v367 = vadd.f32 0.0, %v366
    %v368 = vpop.f32.mrb[0].mxu0
    %v369 = vpop.f32.mrb[0].mxu0
    %v370 = vpop.f32.mrb[0].mxu0
    %371 = vdwg.mxu0
    %v372 = vld [vmem:[#allocation5 + $0x280] sm:$0xff]
    %v373 = vld [vmem:[#allocation5 + $0x290] sm:$0xff]
    %v374 = vld [vmem:[#allocation5 + $0x2a0] sm:$0xff]
    %v375 = vld [vmem:[#allocation5 + $0x2b0] sm:$0xff]
    %v376 = vld [vmem:[#allocation5 + $0x2c0] sm:$0xff]
    %v377 = vld [vmem:[#allocation5 + $0x2d0] sm:$0x3]
    %v378 = vld [vmem:[#allocation5 + $0x2e0] ss:$0 sm:$0xff]
    %vm379 = vcmask 343040
    %v381 = vsel %vm379, %v367, 0
    %v384 = vsel %vm171, %v377, 0
    %386 = vmatprep.subr.mxu0 0.0
    %387 = vmatpush1.msra.mxu0 %v372
    %388 = vmatprep.subr.mxu0 0.0
    %389 = vmatpush1.msra.mxu0 %v373
    %390 = vmatprep.subr.mxu0 0.0
    %391 = vmatpush1.msra.mxu0 %v374
    %392 = vmatprep.subr.mxu0 0.0
    %393 = vmatpush1.msra.mxu0 %v375
    %394 = vmatprep.subr.mxu0 0.0
    %395 = vmatpush1.msra.mxu0 %v376
    %396 = vmatprep.subr.mxu0 0.0
    %397 = vmatpush1.msra.mxu0 %v384
    %398 = vmatprep.subr.mxu0 0.0
    %399 = vmatpush1.msra.mxu0 0.0
    %400 = vmatprep.subr.mxu0 0.0
    %401 = vmatpush1.msra.mxu0 0.0
    %402 = vmatprep.subr.mxu0 0.0
    %403 = vmatpush1.msra.mxu0 0.0
    %404 = vmatprep.subr.mxu0 0.0
    %405 = vmatpush1.msra.mxu0 0.0
    %406 = vmatprep.subr.mxu0 0.0
    %407 = vmatpush1.msra.mxu0 0.0
    %408 = vmatprep.subr.mxu0 0.0
    %409 = vmatpush1.msra.mxu0 0.0
    %410 = vmatprep.subr.mxu0 0.0
    %411 = vmatpush1.msra.mxu0 0.0
    %412 = vmatprep.subr.mxu0 0.0
    %413 = vmatpush1.msra.mxu0 0.0
    %414 = vmatprep.subr.mxu0 0.0
    %415 = vmatpush1.msra.mxu0 0.0
    %416 = vmatprep.subr.mxu0 0.0
    %417 = vmatpush1.msra.mxu0 0.0
    %418 = vmatprep.subr.mxu0 0.0
    %419 = vmatpush1.msra.mxu0 0.0
    %420 = vmatprep.subr.mxu0 0.0
    %421 = vmatpush1.msra.mxu0 0.0
    %422 = vmatprep.subr.mxu0 0.0
    %423 = vmatpush1.msra.mxu0 0.0
    %424 = vmatprep.subr.mxu0 0.0
    %425 = vmatpush1.msra.mxu0 0.0
    %426 = vmatprep.subr.mxu0 0.0
    %427 = vmatpush1.msra.mxu0 0.0
    %428 = vmatprep.subr.mxu0 0.0
    %429 = vmatpush1.msra.mxu0 0.0
    %430 = vmatprep.subr.mxu0 0.0
    %431 = vmatpush1.msra.mxu0 0.0
    %432 = vmatprep.subr.mxu0 0.0
    %433 = vmatpush1.msra.mxu0 0.0
    %434 = vmatprep.subr.mxu0 0.0
    %435 = vmatpush1.msra.mxu0 0.0
    %436 = vmatprep.subr.mxu0 0.0
    %437 = vmatpush1.msra.mxu0 0.0
    %438 = vmatprep.subr.mxu0 0.0
    %439 = vmatpush1.msra.mxu0 0.0
    %440 = vmatprep.subr.mxu0 0.0
    %441 = vmatpush1.msra.mxu0 0.0
    %442 = vmatprep.subr.mxu0 0.0
    %443 = vmatpush1.msra.mxu0 0.0
    %444 = vmatprep.subr.mxu0 0.0
    %445 = vmatpush1.msra.mxu0 0.0
    %446 = vmatprep.subr.mxu0 0.0
    %447 = vmatpush1.msra.mxu0 0.0
    %448 = vmatprep.subr.mxu0 0.0
    %449 = vmatpush1.msra.mxu0 0.0
    %450 = vmatprep.mubr.f32.mxu0 0.0
    %451 = vmatmul.mubr.f32.gmra.mrb[0].mxu0 %v381
    %v452 = vpop.f32.mrb[0].mxu0
    %v453 = vadd.f32 %v378, %v452
    %v454 = vpop.f32.mrb[0].mxu0
    %455 = vdwg.mxu0
    %v456 = vmax.f32 %v453, 0.0
    %v457 = vld [vmem:[#allocation5 + $0x2f0] sm:$0xff]
    %v458 = vld [vmem:[#allocation5 + $0x300] sm:$0xff]
    %v459 = vld [vmem:[#allocation5 + $0x310] sm:$0xff]
    %v460 = vld [vmem:[#allocation5 + $0x320] sm:$0xff]
    %v461 = vld [vmem:[#allocation5 + $0x330] sm:$0xff]
    %v462 = vld [vmem:[#allocation5 + $0x340] sm:$0x3]
    %v464 = vsel %vm379, %v456, 0
    %v467 = vsel %vm171, %v462, 0
    %469 = vmatprep.subr.mxu0 0.0
    %470 = vmatpush1.msra.mxu0 %v457
    %471 = vmatprep.subr.mxu0 0.0
    %472 = vmatpush1.msra.mxu0 %v458
    %473 = vmatprep.subr.mxu0 0.0
    %474 = vmatpush1.msra.mxu0 %v459
    %475 = vmatprep.subr.mxu0 0.0
    %476 = vmatpush1.msra.mxu0 %v460
    %477 = vmatprep.subr.mxu0 0.0
    %478 = vmatpush1.msra.mxu0 %v461
    %479 = vmatprep.subr.mxu0 0.0
    %480 = vmatpush1.msra.mxu0 %v467
    %481 = vmatprep.subr.mxu0 0.0
    %482 = vmatpush1.msra.mxu0 0.0
    %483 = vmatprep.subr.mxu0 0.0
    %484 = vmatpush1.msra.mxu0 0.0
    %485 = vmatprep.subr.mxu0 0.0
    %486 = vmatpush1.msra.mxu0 0.0
    %487 = vmatprep.subr.mxu0 0.0
    %488 = vmatpush1.msra.mxu0 0.0
    %489 = vmatprep.subr.mxu0 0.0
    %490 = vmatpush1.msra.mxu0 0.0
    %491 = vmatprep.subr.mxu0 0.0
    %492 = vmatpush1.msra.mxu0 0.0
    %493 = vmatprep.subr.mxu0 0.0
    %494 = vmatpush1.msra.mxu0 0.0
    %495 = vmatprep.subr.mxu0 0.0
    %496 = vmatpush1.msra.mxu0 0.0
    %497 = vmatprep.subr.mxu0 0.0
    %498 = vmatpush1.msra.mxu0 0.0
    %499 = vmatprep.subr.mxu0 0.0
    %500 = vmatpush1.msra.mxu0 0.0
    %501 = vmatprep.subr.mxu0 0.0
    %502 = vmatpush1.msra.mxu0 0.0
    %503 = vmatprep.subr.mxu0 0.0
    %504 = vmatpush1.msra.mxu0 0.0
    %505 = vmatprep.subr.mxu0 0.0
    %506 = vmatpush1.msra.mxu0 0.0
    %507 = vmatprep.subr.mxu0 0.0
    %508 = vmatpush1.msra.mxu0 0.0
    %509 = vmatprep.subr.mxu0 0.0
    %510 = vmatpush1.msra.mxu0 0.0
    %511 = vmatprep.subr.mxu0 0.0
    %512 = vmatpush1.msra.mxu0 0.0
    %513 = vmatprep.subr.mxu0 0.0
    %514 = vmatpush1.msra.mxu0 0.0
    %515 = vmatprep.subr.mxu0 0.0
    %516 = vmatpush1.msra.mxu0 0.0
    %517 = vmatprep.subr.mxu0 0.0
    %518 = vmatpush1.msra.mxu0 0.0
    %519 = vmatprep.subr.mxu0 0.0
    %520 = vmatpush1.msra.mxu0 0.0
    %521 = vmatprep.subr.mxu0 0.0
    %522 = vmatpush1.msra.mxu0 0.0
    %523 = vmatprep.subr.mxu0 0.0
    %524 = vmatpush1.msra.mxu0 0.0
    %525 = vmatprep.subr.mxu0 0.0
    %526 = vmatpush1.msra.mxu0 0.0
    %527 = vmatprep.subr.mxu0 0.0
    %528 = vmatpush1.msra.mxu0 0.0
    %529 = vmatprep.subr.mxu0 0.0
    %530 = vmatpush1.msra.mxu0 0.0
    %531 = vmatprep.subr.mxu0 0.0
    %532 = vmatpush1.msra.mxu0 0.0
    %533 = vmatprep.mubr.f32.mxu0 0.0
    %534 = vmatmul.mubr.f32.gmra.mrb[0].mxu0 %v464
    %v535 = vpop.f32.mrb[0].mxu0
    %v536 = vadd.f32 0.0, %v535
    %v537 = vpop.f32.mrb[0].mxu0
    %538 = vdwg.mxu0
    %539 = vset.pattern.permute.xlu0 46
    %540 = vperm.xlu0 %539, %v50
    %v541 = vpop.permute.xlu0 %540
    %v543 = vmul.f32 %v541, %v536
    %v544 = vpack.c.bf16 %v543, %v543
    %v546 = vsel %vm249, %v544, 0
    %548 = vmatprep.subr.bf16.mxu0 0
    %549 = vmatpush1.bf16.msra.mxu0 %v546
    %550 = vmatprep.subr.bf16.mxu0 0
    %551 = vmatpush1.bf16.msra.mxu0 0
    %552 = vmatprep.subr.bf16.mxu0 0
    %553 = vmatpush1.bf16.msra.mxu0 0
    %554 = vmatprep.subr.bf16.mxu0 0
    %555 = vmatpush1.bf16.msra.mxu0 0
    %556 = vmatprep.subr.bf16.mxu0 0
    %557 = vmatpush1.bf16.msra.mxu0 0
    %558 = vmatprep.subr.bf16.mxu0 0
    %559 = vmatpush1.bf16.msra.mxu0 0
    %560 = vmatprep.subr.bf16.mxu0 0
    %561 = vmatpush1.bf16.msra.mxu0 0
    %562 = vmatprep.subr.bf16.mxu0 0
    %563 = vmatpush1.bf16.msra.mxu0 0
    %564 = vmatprep.subr.bf16.mxu0 0
    %565 = vmatpush1.bf16.msra.mxu0 0
    %566 = vmatprep.subr.bf16.mxu0 0
    %567 = vmatpush1.bf16.msra.mxu0 0
    %568 = vmatprep.subr.bf16.mxu0 0
    %569 = vmatpush1.bf16.msra.mxu0 0
    %570 = vmatprep.subr.bf16.mxu0 0
    %571 = vmatpush1.bf16.msra.mxu0 0
    %572 = vmatprep.subr.bf16.mxu0 0
    %573 = vmatpush1.bf16.msra.mxu0 0
    %574 = vmatprep.subr.bf16.mxu0 0
    %575 = vmatpush1.bf16.msra.mxu0 0
    %576 = vmatprep.subr.bf16.mxu0 0
    %577 = vmatpush1.bf16.msra.mxu0 0
    %578 = vmatprep.subr.bf16.mxu0 0
    %579 = vmatpush1.bf16.msra.mxu0 0
    %580 = vmatprep.mubr.bf16.mxu0 0
    %581 = vmatmul.mubr.bf16.gmra.mrb[0].mxu0 %v327
    %v582 = vpop.f32.mrb[0].mxu0
    %v583 = vadd.f32 %v543, %v582
    %v584 = vpop.f32.mrb[0].mxu0
    %v585 = vpop.f32.mrb[0].mxu0
    %v586 = vpop.f32.mrb[0].mxu0
    %587 = vdwg.mxu0
    %v588 = vmul.f32 %v541, %v583
    %v589 = vld [vmem:[#allocation5 + $0x350] ss:$0 sm:$0xff]
    %v590 = vadd.f32 %v588, %v589
    %v591 = vmax.f32 %v590, 0.0
    %v592 = vld [vmem:[#allocation5 + $0x360] sm:$0xff]
    %v593 = vld [vmem:[#allocation5 + $0x370] sm:$0xff]
    %v594 = vld [vmem:[#allocation5 + $0x380] sm:$0xff]
    %v595 = vld [vmem:[#allocation5 + $0x390] sm:$0xff]
    %v596 = vld [vmem:[#allocation5 + $0x3a0] sm:$0xff]
    %v597 = vld [vmem:[#allocation5 + $0x3b0] sm:$0xff]
    %v598 = vld [vmem:[#allocation5 + $0x3c0] sm:$0xff]
    %v599 = vld [vmem:[#allocation5 + $0x3d0] sm:$0xff]
    %v600 = vld [vmem:[#allocation5 + $0x3e0] sm:$0xff]
    %vm601 = vcmask 588800
    %v603 = vsel %vm601, %v591, 0
    %605 = vmatprep.subr.mxu0 0.0
    %606 = vmatpush1.msra.mxu0 %v592
    %607 = vmatprep.subr.mxu0 0.0
    %608 = vmatpush1.msra.mxu0 %v593
    %609 = vmatprep.subr.mxu0 0.0
    %610 = vmatpush1.msra.mxu0 %v594
    %611 = vmatprep.subr.mxu0 0.0
    %612 = vmatpush1.msra.mxu0 %v595
    %613 = vmatprep.subr.mxu0 0.0
    %614 = vmatpush1.msra.mxu0 %v596
    %615 = vmatprep.subr.mxu0 0.0
    %616 = vmatpush1.msra.mxu0 %v597
    %617 = vmatprep.subr.mxu0 0.0
    %618 = vmatpush1.msra.mxu0 %v598
    %619 = vmatprep.subr.mxu0 0.0
    %620 = vmatpush1.msra.mxu0 %v599
    %621 = vmatprep.subr.mxu0 0.0
    %622 = vmatpush1.msra.mxu0 %v600
    %623 = vmatprep.subr.mxu0 0.0
    %624 = vmatpush1.msra.mxu0 0.0
    %625 = vmatprep.subr.mxu0 0.0
    %626 = vmatpush1.msra.mxu0 0.0
    %627 = vmatprep.subr.mxu0 0.0
    %628 = vmatpush1.msra.mxu0 0.0
    %629 = vmatprep.subr.mxu0 0.0
    %630 = vmatpush1.msra.mxu0 0.0
    %631 = vmatprep.subr.mxu0 0.0
    %632 = vmatpush1.msra.mxu0 0.0
    %633 = vmatprep.subr.mxu0 0.0
    %634 = vmatpush1.msra.mxu0 0.0
    %635 = vmatprep.subr.mxu0 0.0
    %636 = vmatpush1.msra.mxu0 0.0
    %637 = vmatprep.subr.mxu0 0.0
    %638 = vmatpush1.msra.mxu0 0.0
    %639 = vmatprep.subr.mxu0 0.0
    %640 = vmatpush1.msra.mxu0 0.0
    %641 = vmatprep.subr.mxu0 0.0
    %642 = vmatpush1.msra.mxu0 0.0
    %643 = vmatprep.subr.mxu0 0.0
    %644 = vmatpush1.msra.mxu0 0.0
    %645 = vmatprep.subr.mxu0 0.0
    %646 = vmatpush1.msra.mxu0 0.0
    %647 = vmatprep.subr.mxu0 0.0
    %648 = vmatpush1.msra.mxu0 0.0
    %649 = vmatprep.subr.mxu0 0.0
    %650 = vmatpush1.msra.mxu0 0.0
    %651 = vmatprep.subr.mxu0 0.0
    %652 = vmatpush1.msra.mxu0 0.0
    %653 = vmatprep.subr.mxu0 0.0
    %654 = vmatpush1.msra.mxu0 0.0
    %655 = vmatprep.subr.mxu0 0.0
    %656 = vmatpush1.msra.mxu0 0.0
    %657 = vmatprep.subr.mxu0 0.0
    %658 = vmatpush1.msra.mxu0 0.0
    %659 = vmatprep.subr.mxu0 0.0
    %660 = vmatpush1.msra.mxu0 0.0
    %661 = vmatprep.subr.mxu0 0.0
    %662 = vmatpush1.msra.mxu0 0.0
    %663 = vmatprep.subr.mxu0 0.0
    %664 = vmatpush1.msra.mxu0 0.0
    %665 = vmatprep.subr.mxu0 0.0
    %666 = vmatpush1.msra.mxu0 0.0
    %667 = vmatprep.subr.mxu0 0.0
    %668 = vmatpush1.msra.mxu0 0.0
    %669 = vmatprep.mubr.f32.mxu0 0.0
    %670 = vmatmul.mubr.f32.gmra.mrb[0].mxu0 %v603
    %v671 = vpop.f32.mrb[0].mxu0
    %v672 = vadd.f32 %v156, %v671
    %v673 = vpop.f32.mrb[0].mxu0
    %674 = vdwg.mxu0
    %v675 = vld [vmem:[#allocation5 + $0x3f0] sm:$0xff]
    %v676 = vld [vmem:[#allocation5 + $0x400] sm:$0xff]
    %v677 = vld [vmem:[#allocation5 + $0x410] sm:$0xff]
    %v678 = vld [vmem:[#allocation5 + $0x420] sm:$0xff]
    %v679 = vld [vmem:[#allocation5 + $0x430] sm:$0xf]
    %v680 = vld [vmem:[#allocation5 + $0x440] ss:$0 sm:$0xff]
    %v682 = vsel %vm245, %v672, 0
    %v685 = vsel %vm249, %v679, 0
    %687 = vmatprep.subr.mxu0 0.0
    %688 = vmatpush1.msra.mxu0 %v675
    %689 = vmatprep.subr.mxu0 0.0
    %690 = vmatpush1.msra.mxu0 %v676
    %691 = vmatprep.subr.mxu0 0.0
    %692 = vmatpush1.msra.mxu0 %v677
    %693 = vmatprep.subr.mxu0 0.0
    %694 = vmatpush1.msra.mxu0 %v678
    %695 = vmatprep.subr.mxu0 0.0
    %696 = vmatpush1.msra.mxu0 %v685
    %697 = vmatprep.subr.mxu0 0.0
    %698 = vmatpush1.msra.mxu0 0.0
    %699 = vmatprep.subr.mxu0 0.0
    %700 = vmatpush1.msra.mxu0 0.0
    %701 = vmatprep.subr.mxu0 0.0
    %702 = vmatpush1.msra.mxu0 0.0
    %703 = vmatprep.subr.mxu0 0.0
    %704 = vmatpush1.msra.mxu0 0.0
    %705 = vmatprep.subr.mxu0 0.0
    %706 = vmatpush1.msra.mxu0 0.0
    %707 = vmatprep.subr.mxu0 0.0
    %708 = vmatpush1.msra.mxu0 0.0
    %709 = vmatprep.subr.mxu0 0.0
    %710 = vmatpush1.msra.mxu0 0.0
    %711 = vmatprep.subr.mxu0 0.0
    %712 = vmatpush1.msra.mxu0 0.0
    %713 = vmatprep.subr.mxu0 0.0
    %714 = vmatpush1.msra.mxu0 0.0
    %715 = vmatprep.subr.mxu0 0.0
    %716 = vmatpush1.msra.mxu0 0.0
    %717 = vmatprep.subr.mxu0 0.0
    %718 = vmatpush1.msra.mxu0 0.0
    %719 = vmatprep.subr.mxu0 0.0
    %720 = vmatpush1.msra.mxu0 0.0
    %721 = vmatprep.subr.mxu0 0.0
    %722 = vmatpush1.msra.mxu0 0.0
    %723 = vmatprep.subr.mxu0 0.0
    %724 = vmatpush1.msra.mxu0 0.0
    %725 = vmatprep.subr.mxu0 0.0
    %726 = vmatpush1.msra.mxu0 0.0
    %727 = vmatprep.subr.mxu0 0.0
    %728 = vmatpush1.msra.mxu0 0.0
    %729 = vmatprep.subr.mxu0 0.0
    %730 = vmatpush1.msra.mxu0 0.0
    %731 = vmatprep.subr.mxu0 0.0
    %732 = vmatpush1.msra.mxu0 0.0
    %733 = vmatprep.subr.mxu0 0.0
    %734 = vmatpush1.msra.mxu0 0.0
    %735 = vmatprep.subr.mxu0 0.0
    %736 = vmatpush1.msra.mxu0 0.0
    %737 = vmatprep.subr.mxu0 0.0
    %738 = vmatpush1.msra.mxu0 0.0
    %739 = vmatprep.subr.mxu0 0.0
    %740 = vmatpush1.msra.mxu0 0.0
    %741 = vmatprep.subr.mxu0 0.0
    %742 = vmatpush1.msra.mxu0 0.0
    %743 = vmatprep.subr.mxu0 0.0
    %744 = vmatpush1.msra.mxu0 0.0
    %745 = vmatprep.subr.mxu0 0.0
    %746 = vmatpush1.msra.mxu0 0.0
    %747 = vmatprep.subr.mxu0 0.0
    %748 = vmatpush1.msra.mxu0 0.0
    %749 = vmatprep.subr.mxu0 0.0
    %750 = vmatpush1.msra.mxu0 0.0
    %751 = vmatprep.mubr.f32.mxu0 0.0
    %752 = vmatmul.mubr.f32.gmra.mrb[0].mxu0 %v682
    %v753 = vpop.f32.mrb[0].mxu0
    %v754 = vadd.f32 %v680, %v753
    %v755 = vpop.f32.mrb[0].mxu0
    %756 = vdwg.mxu0
    %v757 = vmax.f32 %v754, 0.0
    %v758 = vld [vmem:[#allocation5 + $0x450] sm:$0xff]
    %v759 = vld [vmem:[#allocation5 + $0x460] sm:$0xff]
    %v760 = vld [vmem:[#allocation5 + $0x470] sm:$0xff]
    %v761 = vld [vmem:[#allocation5 + $0x480] ss:$0 sm:$0xff]
    %vm762 = vcmask 195584
    %v764 = vsel %vm762, %v757, 0
    %766 = vmatprep.subr.mxu0 0.0
    %767 = vmatpush1.msra.mxu0 %v758
    %768 = vmatprep.subr.mxu0 0.0
    %769 = vmatpush1.msra.mxu0 %v759
    %770 = vmatprep.subr.mxu0 0.0
    %771 = vmatpush1.msra.mxu0 %v760
    %772 = vmatprep.subr.mxu0 0.0
    %773 = vmatpush1.msra.mxu0 0.0
    %774 = vmatprep.subr.mxu0 0.0
    %775 = vmatpush1.msra.mxu0 0.0
    %776 = vmatprep.subr.mxu0 0.0
    %777 = vmatpush1.msra.mxu0 0.0
    %778 = vmatprep.subr.mxu0 0.0
    %779 = vmatpush1.msra.mxu0 0.0
    %780 = vmatprep.subr.mxu0 0.0
    %781 = vmatpush1.msra.mxu0 0.0
    %782 = vmatprep.subr.mxu0 0.0
    %783 = vmatpush1.msra.mxu0 0.0
    %784 = vmatprep.subr.mxu0 0.0
    %785 = vmatpush1.msra.mxu0 0.0
    %786 = vmatprep.subr.mxu0 0.0
    %787 = vmatpush1.msra.mxu0 0.0
    %788 = vmatprep.subr.mxu0 0.0
    %789 = vmatpush1.msra.mxu0 0.0
    %790 = vmatprep.subr.mxu0 0.0
    %791 = vmatpush1.msra.mxu0 0.0
    %792 = vmatprep.subr.mxu0 0.0
    %793 = vmatpush1.msra.mxu0 0.0
    %794 = vmatprep.subr.mxu0 0.0
    %795 = vmatpush1.msra.mxu0 0.0
    %796 = vmatprep.subr.mxu0 0.0
    %797 = vmatpush1.msra.mxu0 0.0
    %798 = vmatprep.subr.mxu0 0.0
    %799 = vmatpush1.msra.mxu0 0.0
    %800 = vmatprep.subr.mxu0 0.0
    %801 = vmatpush1.msra.mxu0 0.0
    %802 = vmatprep.subr.mxu0 0.0
    %803 = vmatpush1.msra.mxu0 0.0
    %804 = vmatprep.subr.mxu0 0.0
    %805 = vmatpush1.msra.mxu0 0.0
    %806 = vmatprep.subr.mxu0 0.0
    %807 = vmatpush1.msra.mxu0 0.0
    %808 = vmatprep.subr.mxu0 0.0
    %809 = vmatpush1.msra.mxu0 0.0
    %810 = vmatprep.subr.mxu0 0.0
    %811 = vmatpush1.msra.mxu0 0.0
    %812 = vmatprep.subr.mxu0 0.0
    %813 = vmatpush1.msra.mxu0 0.0
    %814 = vmatprep.subr.mxu0 0.0
    %815 = vmatpush1.msra.mxu0 0.0
    %816 = vmatprep.subr.mxu0 0.0
    %817 = vmatpush1.msra.mxu0 0.0
    %818 = vmatprep.subr.mxu0 0.0
    %819 = vmatpush1.msra.mxu0 0.0
    %820 = vmatprep.subr.mxu0 0.0
    %821 = vmatpush1.msra.mxu0 0.0
    %822 = vmatprep.subr.mxu0 0.0
    %823 = vmatpush1.msra.mxu0 0.0
    %824 = vmatprep.subr.mxu0 0.0
    %825 = vmatpush1.msra.mxu0 0.0
    %826 = vmatprep.subr.mxu0 0.0
    %827 = vmatpush1.msra.mxu0 0.0
    %828 = vmatprep.subr.mxu0 0.0
    %829 = vmatpush1.msra.mxu0 0.0
    %830 = vmatprep.mubr.f32.mxu0 0.0
    %831 = vmatmul.mubr.f32.gmra.mrb[0].mxu0 %v764
    %v832 = vpop.f32.mrb[0].mxu0
    %v833 = vadd.f32 %v761, %v832
    %v834 = vpop.f32.mrb[0].mxu0
    %835 = vdwg.mxu0
    %v836 = vsel %vm245, %v833, -inf
    %v837 = vrot.slane %v836, 4
    %v838 = vmax.f32 %v836, %v837
    %v839 = vrot.slane %v838, 2
    %v840 = vmax.f32 %v838, %v839
    %v841 = vrot.slane %v840, 1
    %v842 = vmax.f32 %v840, %v841
    %v843 = vsub.f32 %v833, %v842
    %v844 = vmul.f32 %v843, 1.442695
    %v845 = vpow.pop %v844
    %v846 = vpack.c.bf16 %v845, %v845
    %v848 = vsel %vm325, %v51, 0
    %v851 = vsel %vm249, %v846, 0
    %853 = vmatprep.subr.bf16.mxu0 0
    %854 = vmatpush1.bf16.msra.mxu0 %v851
    %855 = vmatprep.subr.bf16.mxu0 0
    %856 = vmatpush1.bf16.msra.mxu0 0
    %857 = vmatprep.subr.bf16.mxu0 0
    %858 = vmatpush1.bf16.msra.mxu0 0
    %859 = vmatprep.subr.bf16.mxu0 0
    %860 = vmatpush1.bf16.msra.mxu0 0
    %861 = vmatprep.subr.bf16.mxu0 0
    %862 = vmatpush1.bf16.msra.mxu0 0
    %863 = vmatprep.subr.bf16.mxu0 0
    %864 = vmatpush1.bf16.msra.mxu0 0
    %865 = vmatprep.subr.bf16.mxu0 0
    %866 = vmatpush1.bf16.msra.mxu0 0
    %867 = vmatprep.subr.bf16.mxu0 0
    %868 = vmatpush1.bf16.msra.mxu0 0
    %869 = vmatprep.subr.bf16.mxu0 0
    %870 = vmatpush1.bf16.msra.mxu0 0
    %871 = vmatprep.subr.bf16.mxu0 0
    %872 = vmatpush1.bf16.msra.mxu0 0
    %873 = vmatprep.subr.bf16.mxu0 0
    %874 = vmatpush1.bf16.msra.mxu0 0
    %875 = vmatprep.subr.bf16.mxu0 0
    %876 = vmatpush1.bf16.msra.mxu0 0
    %877 = vmatprep.subr.bf16.mxu0 0
    %878 = vmatpush1.bf16.msra.mxu0 0
    %879 = vmatprep.subr.bf16.mxu0 0
    %880 = vmatpush1.bf16.msra.mxu0 0
    %881 = vmatprep.subr.bf16.mxu0 0
    %882 = vmatpush1.bf16.msra.mxu0 0
    %883 = vmatprep.subr.bf16.mxu0 0
    %884 = vmatpush1.bf16.msra.mxu0 0
    %885 = vmatprep.mubr.bf16.mxu0 0
    %886 = vmatmul.mubr.bf16.gmra.mrb[0].mxu0 %v848
    %v887 = vpop.f32.mrb[0].mxu0
    %v888 = vadd.f32 0.0, %v887
    %v889 = vpop.f32.mrb[0].mxu0
    %v890 = vpop.f32.mrb[0].mxu0
    %v891 = vpop.f32.mrb[0].mxu0
    %892 = vdwg.mxu0
    %v893 = vpack.c.bf16 %v888, %v888
    %vm894 = vcmask 15360
    %v896 = vsel %vm894, %v52, 0
    %vm898 = vcmask 1040384
    %v900 = vsel %vm898, %v893, 0
    %902 = vmatprep.subr.bf16.mxu0 0
    %903 = vmatpush1.bf16.msra.mxu0 %v900
    %904 = vmatprep.subr.bf16.mxu0 0
    %905 = vmatpush1.bf16.msra.mxu0 0
    %906 = vmatprep.subr.bf16.mxu0 0
    %907 = vmatpush1.bf16.msra.mxu0 0
    %908 = vmatprep.subr.bf16.mxu0 0
    %909 = vmatpush1.bf16.msra.mxu0 0
    %910 = vmatprep.subr.bf16.mxu0 0
    %911 = vmatpush1.bf16.msra.mxu0 0
    %912 = vmatprep.subr.bf16.mxu0 0
    %913 = vmatpush1.bf16.msra.mxu0 0
    %914 = vmatprep.subr.bf16.mxu0 0
    %915 = vmatpush1.bf16.msra.mxu0 0
    %916 = vmatprep.subr.bf16.mxu0 0
    %917 = vmatpush1.bf16.msra.mxu0 0
    %918 = vmatprep.subr.bf16.mxu0 0
    %919 = vmatpush1.bf16.msra.mxu0 0
    %920 = vmatprep.subr.bf16.mxu0 0
    %921 = vmatpush1.bf16.msra.mxu0 0
    %922 = vmatprep.subr.bf16.mxu0 0
    %923 = vmatpush1.bf16.msra.mxu0 0
    %924 = vmatprep.subr.bf16.mxu0 0
    %925 = vmatpush1.bf16.msra.mxu0 0
    %926 = vmatprep.subr.bf16.mxu0 0
    %927 = vmatpush1.bf16.msra.mxu0 0
    %928 = vmatprep.subr.bf16.mxu0 0
    %929 = vmatpush1.bf16.msra.mxu0 0
    %930 = vmatprep.subr.bf16.mxu0 0
    %931 = vmatpush1.bf16.msra.mxu0 0
    %932 = vmatprep.subr.bf16.mxu0 0
    %933 = vmatpush1.bf16.msra.mxu0 0
    %934 = vmatprep.mubr.bf16.mxu0 0
    %935 = vmatmul.mubr.bf16.gmra.mrb[0].mxu0 %v896
    %v936 = vpop.f32.mrb[0].mxu0
    %v937 = vadd.f32 0.0, %v936
    %v938 = vpop.f32.mrb[0].mxu0
    %v939 = vpop.f32.mrb[0].mxu0
    %v940 = vpop.f32.mrb[0].mxu0
    %941 = vdwg.mxu0
    %v942 = vrcp.pop %v937
    %v943 = vmul.f32 %v845, %v942
    %v944 = vmul.f32 %v943, %v672
    %v945 = vpack.c.bf16 %v944, %v944
    %v947 = vsel %vm249, %v945, 0
    %949 = vmatprep.subr.bf16.mxu0 0
    %950 = vmatpush1.bf16.msra.mxu0 %v947
    %951 = vmatprep.subr.bf16.mxu0 0
    %952 = vmatpush1.bf16.msra.mxu0 0
    %953 = vmatprep.subr.bf16.mxu0 0
    %954 = vmatpush1.bf16.msra.mxu0 0
    %955 = vmatprep.subr.bf16.mxu0 0
    %956 = vmatpush1.bf16.msra.mxu0 0
    %957 = vmatprep.subr.bf16.mxu0 0
    %958 = vmatpush1.bf16.msra.mxu0 0
    %959 = vmatprep.subr.bf16.mxu0 0
    %960 = vmatpush1.bf16.msra.mxu0 0
    %961 = vmatprep.subr.bf16.mxu0 0
    %962 = vmatpush1.bf16.msra.mxu0 0
    %963 = vmatprep.subr.bf16.mxu0 0
    %964 = vmatpush1.bf16.msra.mxu0 0
    %965 = vmatprep.subr.bf16.mxu0 0
    %966 = vmatpush1.bf16.msra.mxu0 0
    %967 = vmatprep.subr.bf16.mxu0 0
    %968 = vmatpush1.bf16.msra.mxu0 0
    %969 = vmatprep.subr.bf16.mxu0 0
    %970 = vmatpush1.bf16.msra.mxu0 0
    %971 = vmatprep.subr.bf16.mxu0 0
    %972 = vmatpush1.bf16.msra.mxu0 0
    %973 = vmatprep.subr.bf16.mxu0 0
    %974 = vmatpush1.bf16.msra.mxu0 0
    %975 = vmatprep.subr.bf16.mxu0 0
    %976 = vmatpush1.bf16.msra.mxu0 0
    %977 = vmatprep.subr.bf16.mxu0 0
    %978 = vmatpush1.bf16.msra.mxu0 0
    %979 = vmatprep.subr.bf16.mxu0 0
    %980 = vmatpush1.bf16.msra.mxu0 0
    %981 = vmatprep.mubr.bf16.mxu0 0
    %982 = vmatmul.mubr.bf16.gmra.mrb[0].mxu0 %v848
    %v983 = vpop.f32.mrb[0].mxu0
    %v984 = vadd.f32 0.0, %v983
    %v985 = vpop.f32.mrb[0].mxu0
    %v986 = vpop.f32.mrb[0].mxu0
    %v987 = vpop.f32.mrb[0].mxu0
    %988 = vdwg.mxu0
    %v989 = vpack.c.bf16 %v984, %v984
    %v991 = vsel %vm898, %v989, 0
    %993 = vmatprep.subr.bf16.mxu0 0
    %994 = vmatpush1.bf16.msra.mxu0 %v991
    %995 = vmatprep.subr.bf16.mxu0 0
    %996 = vmatpush1.bf16.msra.mxu0 0
    %997 = vmatprep.subr.bf16.mxu0 0
    %998 = vmatpush1.bf16.msra.mxu0 0
    %999 = vmatprep.subr.bf16.mxu0 0
    %1000 = vmatpush1.bf16.msra.mxu0 0
    %1001 = vmatprep.subr.bf16.mxu0 0
    %1002 = vmatpush1.bf16.msra.mxu0 0
    %1003 = vmatprep.subr.bf16.mxu0 0
    %1004 = vmatpush1.bf16.msra.mxu0 0
    %1005 = vmatprep.subr.bf16.mxu0 0
    %1006 = vmatpush1.bf16.msra.mxu0 0
    %1007 = vmatprep.subr.bf16.mxu0 0
    %1008 = vmatpush1.bf16.msra.mxu0 0
    %1009 = vmatprep.subr.bf16.mxu0 0
    %1010 = vmatpush1.bf16.msra.mxu0 0
    %1011 = vmatprep.subr.bf16.mxu0 0
    %1012 = vmatpush1.bf16.msra.mxu0 0
    %1013 = vmatprep.subr.bf16.mxu0 0
    %1014 = vmatpush1.bf16.msra.mxu0 0
    %1015 = vmatprep.subr.bf16.mxu0 0
    %1016 = vmatpush1.bf16.msra.mxu0 0
    %1017 = vmatprep.subr.bf16.mxu0 0
    %1018 = vmatpush1.bf16.msra.mxu0 0
    %1019 = vmatprep.subr.bf16.mxu0 0
    %1020 = vmatpush1.bf16.msra.mxu0 0
    %1021 = vmatprep.subr.bf16.mxu0 0
    %1022 = vmatpush1.bf16.msra.mxu0 0
    %1023 = vmatprep.subr.bf16.mxu0 0
    %1024 = vmatpush1.bf16.msra.mxu0 0
    %1025 = vmatprep.mubr.bf16.mxu0 0
    %1026 = vmatmul.mubr.bf16.gmra.mrb[0].mxu0 %v896
    %v1027 = vpop.f32.mrb[0].mxu0
    %v1028 = vadd.f32 0.0, %v1027
    %v1029 = vpop.f32.mrb[0].mxu0
    %v1030 = vpop.f32.mrb[0].mxu0
    %v1031 = vpop.f32.mrb[0].mxu0
    %1032 = vdwg.mxu0
    %v1033 = vld [vmem:[#allocation5 + $0x490] sm:$0xff]
    %v1034 = vld [vmem:[#allocation5 + $0x4a0] sm:$0xff]
    %v1035 = vld [vmem:[#allocation5 + $0x4b0] sm:$0xff]
    %v1036 = vld [vmem:[#allocation5 + $0x4c0] sm:$0xff]
    %v1037 = vld [vmem:[#allocation5 + $0x4d0] sm:$0xf]
    %v1039 = vsel %vm245, %v1028, 0
    %v1042 = vsel %vm249, %v1037, 0
    %1044 = vmatprep.subr.mxu0 0.0
    %1045 = vmatpush1.msra.mxu0 %v1033
    %1046 = vmatprep.subr.mxu0 0.0
    %1047 = vmatpush1.msra.mxu0 %v1034
    %1048 = vmatprep.subr.mxu0 0.0
    %1049 = vmatpush1.msra.mxu0 %v1035
    %1050 = vmatprep.subr.mxu0 0.0
    %1051 = vmatpush1.msra.mxu0 %v1036
    %1052 = vmatprep.subr.mxu0 0.0
    %1053 = vmatpush1.msra.mxu0 %v1042
    %1054 = vmatprep.subr.mxu0 0.0
    %1055 = vmatpush1.msra.mxu0 0.0
    %1056 = vmatprep.subr.mxu0 0.0
    %1057 = vmatpush1.msra.mxu0 0.0
    %1058 = vmatprep.subr.mxu0 0.0
    %1059 = vmatpush1.msra.mxu0 0.0
    %1060 = vmatprep.subr.mxu0 0.0
    %1061 = vmatpush1.msra.mxu0 0.0
    %1062 = vmatprep.subr.mxu0 0.0
    %1063 = vmatpush1.msra.mxu0 0.0
    %1064 = vmatprep.subr.mxu0 0.0
    %1065 = vmatpush1.msra.mxu0 0.0
    %1066 = vmatprep.subr.mxu0 0.0
    %1067 = vmatpush1.msra.mxu0 0.0
    %1068 = vmatprep.subr.mxu0 0.0
    %1069 = vmatpush1.msra.mxu0 0.0
    %1070 = vmatprep.subr.mxu0 0.0
    %1071 = vmatpush1.msra.mxu0 0.0
    %1072 = vmatprep.subr.mxu0 0.0
    %1073 = vmatpush1.msra.mxu0 0.0
    %1074 = vmatprep.subr.mxu0 0.0
    %1075 = vmatpush1.msra.mxu0 0.0
    %1076 = vmatprep.subr.mxu0 0.0
    %1077 = vmatpush1.msra.mxu0 0.0
    %1078 = vmatprep.subr.mxu0 0.0
    %1079 = vmatpush1.msra.mxu0 0.0
    %1080 = vmatprep.subr.mxu0 0.0
    %1081 = vmatpush1.msra.mxu0 0.0
    %1082 = vmatprep.subr.mxu0 0.0
    %1083 = vmatpush1.msra.mxu0 0.0
    %1084 = vmatprep.subr.mxu0 0.0
    %1085 = vmatpush1.msra.mxu0 0.0
    %1086 = vmatprep.subr.mxu0 0.0
    %1087 = vmatpush1.msra.mxu0 0.0
    %1088 = vmatprep.subr.mxu0 0.0
    %1089 = vmatpush1.msra.mxu0 0.0
    %1090 = vmatprep.subr.mxu0 0.0
    %1091 = vmatpush1.msra.mxu0 0.0
    %1092 = vmatprep.subr.mxu0 0.0
    %1093 = vmatpush1.msra.mxu0 0.0
    %1094 = vmatprep.subr.mxu0 0.0
    %1095 = vmatpush1.msra.mxu0 0.0
    %1096 = vmatprep.subr.mxu0 0.0
    %1097 = vmatpush1.msra.mxu0 0.0
    %1098 = vmatprep.subr.mxu0 0.0
    %1099 = vmatpush1.msra.mxu0 0.0
    %1100 = vmatprep.subr.mxu0 0.0
    %1101 = vmatpush1.msra.mxu0 0.0
    %1102 = vmatprep.subr.mxu0 0.0
    %1103 = vmatpush1.msra.mxu0 0.0
    %1104 = vmatprep.subr.mxu0 0.0
    %1105 = vmatpush1.msra.mxu0 0.0
    %1106 = vmatprep.subr.mxu0 0.0
    %1107 = vmatpush1.msra.mxu0 0.0
    %1108 = vmatprep.mubr.f32.mxu0 0.0
    %1109 = vmatmul.mubr.f32.gmra.mrb[0].mxu0 %v1039
    %v1110 = vpop.f32.mrb[0].mxu0
    %v1111 = vadd.f32 0.0, %v1110
    %v1112 = vpop.f32.mrb[0].mxu0
    %1113 = vdwg.mxu0
    %v1114 = vmul.f32 %v541, %v1111
    %v1115 = vpack.c.bf16 %v1114, %v1114
    %v1117 = vsel %vm249, %v1115, 0
    %1119 = vmatprep.subr.bf16.mxu0 0
    %1120 = vmatpush1.bf16.msra.mxu0 %v1117
    %1121 = vmatprep.subr.bf16.mxu0 0
    %1122 = vmatpush1.bf16.msra.mxu0 0
    %1123 = vmatprep.subr.bf16.mxu0 0
    %1124 = vmatpush1.bf16.msra.mxu0 0
    %1125 = vmatprep.subr.bf16.mxu0 0
    %1126 = vmatpush1.bf16.msra.mxu0 0
    %1127 = vmatprep.subr.bf16.mxu0 0
    %1128 = vmatpush1.bf16.msra.mxu0 0
    %1129 = vmatprep.subr.bf16.mxu0 0
    %1130 = vmatpush1.bf16.msra.mxu0 0
    %1131 = vmatprep.subr.bf16.mxu0 0
    %1132 = vmatpush1.bf16.msra.mxu0 0
    %1133 = vmatprep.subr.bf16.mxu0 0
    %1134 = vmatpush1.bf16.msra.mxu0 0
    %1135 = vmatprep.subr.bf16.mxu0 0
    %1136 = vmatpush1.bf16.msra.mxu0 0
    %1137 = vmatprep.subr.bf16.mxu0 0
    %1138 = vmatpush1.bf16.msra.mxu0 0
    %1139 = vmatprep.subr.bf16.mxu0 0
    %1140 = vmatpush1.bf16.msra.mxu0 0
    %1141 = vmatprep.subr.bf16.mxu0 0
    %1142 = vmatpush1.bf16.msra.mxu0 0
    %1143 = vmatprep.subr.bf16.mxu0 0
    %1144 = vmatpush1.bf16.msra.mxu0 0
    %1145 = vmatprep.subr.bf16.mxu0 0
    %1146 = vmatpush1.bf16.msra.mxu0 0
    %1147 = vmatprep.subr.bf16.mxu0 0
    %1148 = vmatpush1.bf16.msra.mxu0 0
    %1149 = vmatprep.subr.bf16.mxu0 0
    %1150 = vmatpush1.bf16.msra.mxu0 0
    %1151 = vmatprep.mubr.bf16.mxu0 0
    %1152 = vmatmul.mubr.bf16.gmra.mrb[0].mxu0 %v327
    %v1153 = vpop.f32.mrb[0].mxu0
    %v1154 = vadd.f32 %v1114, %v1153
    %v1155 = vpop.f32.mrb[0].mxu0
    %v1156 = vpop.f32.mrb[0].mxu0
    %v1157 = vpop.f32.mrb[0].mxu0
    %1158 = vdwg.mxu0
    %v1159 = vmul.f32 %v541, %v1154
    %v1160 = vld [vmem:[#allocation5 + $0x4e0] ss:$0 sm:$0xff]
    %v1161 = vadd.f32 %v1159, %v1160
    %v1162 = vmax.f32 %v1161, 0.0
    %v1163 = vadd.f32 %v1162, %v50
    %v1164 = vpack.c.bf16 %v1163, %v1163
    %v1166 = vsel %vm249, %v1164, 0
    %1168 = vmatprep.subr.bf16.mxu0 0
    %1169 = vmatpush1.bf16.msra.mxu0 %v1166
    %1170 = vmatprep.subr.bf16.mxu0 0
    %1171 = vmatpush1.bf16.msra.mxu0 0
    %1172 = vmatprep.subr.bf16.mxu0 0
    %1173 = vmatpush1.bf16.msra.mxu0 0
    %1174 = vmatprep.subr.bf16.mxu0 0
    %1175 = vmatpush1.bf16.msra.mxu0 0
    %1176 = vmatprep.subr.bf16.mxu0 0
    %1177 = vmatpush1.bf16.msra.mxu0 0
    %1178 = vmatprep.subr.bf16.mxu0 0
    %1179 = vmatpush1.bf16.msra.mxu0 0
    %1180 = vmatprep.subr.bf16.mxu0 0
    %1181 = vmatpush1.bf16.msra.mxu0 0
    %1182 = vmatprep.subr.bf16.mxu0 0
    %1183 = vmatpush1.bf16.msra.mxu0 0
    %1184 = vmatprep.subr.bf16.mxu0 0
    %1185 = vmatpush1.bf16.msra.mxu0 0
    %1186 = vmatprep.subr.bf16.mxu0 0
    %1187 = vmatpush1.bf16.msra.mxu0 0
    %1188 = vmatprep.subr.bf16.mxu0 0
    %1189 = vmatpush1.bf16.msra.mxu0 0
    %1190 = vmatprep.subr.bf16.mxu0 0
    %1191 = vmatpush1.bf16.msra.mxu0 0
    %1192 = vmatprep.subr.bf16.mxu0 0
    %1193 = vmatpush1.bf16.msra.mxu0 0
    %1194 = vmatprep.subr.bf16.mxu0 0
    %1195 = vmatpush1.bf16.msra.mxu0 0
    %1196 = vmatprep.subr.bf16.mxu0 0
    %1197 = vmatpush1.bf16.msra.mxu0 0
    %1198 = vmatprep.subr.bf16.mxu0 0
    %1199 = vmatpush1.bf16.msra.mxu0 0
    %1200 = vmatprep.mubr.bf16.mxu0 0
    %1201 = vmatmul.mubr.bf16.gmra.mrb[0].mxu0 %v327
    %v1202 = vpop.f32.mrb[0].mxu0
    %v1203 = vadd.f32 0.0, %v1202
    %v1204 = vpop.f32.mrb[0].mxu0
    %v1205 = vpop.f32.mrb[0].mxu0
    %v1206 = vpop.f32.mrb[0].mxu0
    %1207 = vdwg.mxu0
    %v1208 = vld [vmem:[#allocation5 + $0x4f0] sm:$0xff]
    %v1209 = vld [vmem:[#allocation5 + $0x500] sm:$0xff]
    %v1210 = vld [vmem:[#allocation5 + $0x510] sm:$0xff]
    %v1211 = vld [vmem:[#allocation5 + $0x520] sm:$0xff]
    %v1212 = vld [vmem:[#allocation5 + $0x530] sm:$0xf]
    %v1213 = vld [vmem:[#allocation5 + $0x540] ss:$0 sm:$0xff]
    %v1215 = vsel %vm245, %v1203, 0
    %v1218 = vsel %vm249, %v1212, 0
    %1220 = vmatprep.subr.mxu0 0.0
    %1221 = vmatpush1.msra.mxu0 %v1208
    %1222 = vmatprep.subr.mxu0 0.0
    %1223 = vmatpush1.msra.mxu0 %v1209
    %1224 = vmatprep.subr.mxu0 0.0
    %1225 = vmatpush1.msra.mxu0 %v1210
    %1226 = vmatprep.subr.mxu0 0.0
    %1227 = vmatpush1.msra.mxu0 %v1211
    %1228 = vmatprep.subr.mxu0 0.0
    %1229 = vmatpush1.msra.mxu0 %v1218
    %1230 = vmatprep.subr.mxu0 0.0
    %1231 = vmatpush1.msra.mxu0 0.0
    %1232 = vmatprep.subr.mxu0 0.0
    %1233 = vmatpush1.msra.mxu0 0.0
    %1234 = vmatprep.subr.mxu0 0.0
    %1235 = vmatpush1.msra.mxu0 0.0
    %1236 = vmatprep.subr.mxu0 0.0
    %1237 = vmatpush1.msra.mxu0 0.0
    %1238 = vmatprep.subr.mxu0 0.0
    %1239 = vmatpush1.msra.mxu0 0.0
    %1240 = vmatprep.subr.mxu0 0.0
    %1241 = vmatpush1.msra.mxu0 0.0
    %1242 = vmatprep.subr.mxu0 0.0
    %1243 = vmatpush1.msra.mxu0 0.0
    %1244 = vmatprep.subr.mxu0 0.0
    %1245 = vmatpush1.msra.mxu0 0.0
    %1246 = vmatprep.subr.mxu0 0.0
    %1247 = vmatpush1.msra.mxu0 0.0
    %1248 = vmatprep.subr.mxu0 0.0
    %1249 = vmatpush1.msra.mxu0 0.0
    %1250 = vmatprep.subr.mxu0 0.0
    %1251 = vmatpush1.msra.mxu0 0.0
    %1252 = vmatprep.subr.mxu0 0.0
    %1253 = vmatpush1.msra.mxu0 0.0
    %1254 = vmatprep.subr.mxu0 0.0
    %1255 = vmatpush1.msra.mxu0 0.0
    %1256 = vmatprep.subr.mxu0 0.0
    %1257 = vmatpush1.msra.mxu0 0.0
    %1258 = vmatprep.subr.mxu0 0.0
    %1259 = vmatpush1.msra.mxu0 0.0
    %1260 = vmatprep.subr.mxu0 0.0
    %1261 = vmatpush1.msra.mxu0 0.0
    %1262 = vmatprep.subr.mxu0 0.0
    %1263 = vmatpush1.msra.mxu0 0.0
    %1264 = vmatprep.subr.mxu0 0.0
    %1265 = vmatpush1.msra.mxu0 0.0
    %1266 = vmatprep.subr.mxu0 0.0
    %1267 = vmatpush1.msra.mxu0 0.0
    %1268 = vmatprep.subr.mxu0 0.0
    %1269 = vmatpush1.msra.mxu0 0.0
    %1270 = vmatprep.subr.mxu0 0.0
    %1271 = vmatpush1.msra.mxu0 0.0
    %1272 = vmatprep.subr.mxu0 0.0
    %1273 = vmatpush1.msra.mxu0 0.0
    %1274 = vmatprep.subr.mxu0 0.0
    %1275 = vmatpush1.msra.mxu0 0.0
    %1276 = vmatprep.subr.mxu0 0.0
    %1277 = vmatpush1.msra.mxu0 0.0
    %1278 = vmatprep.subr.mxu0 0.0
    %1279 = vmatpush1.msra.mxu0 0.0
    %1280 = vmatprep.subr.mxu0 0.0
    %1281 = vmatpush1.msra.mxu0 0.0
    %1282 = vmatprep.subr.mxu0 0.0
    %1283 = vmatpush1.msra.mxu0 0.0
    %1284 = vmatprep.mubr.f32.mxu0 0.0
    %1285 = vmatmul.mubr.f32.gmra.mrb[0].mxu0 %v1215
    %v1286 = vpop.f32.mrb[0].mxu0
    %v1287 = vadd.f32 %v1213, %v1286
    %v1288 = vpop.f32.mrb[0].mxu0
    %1289 = vdwg.mxu0
    %v1290 = vmax.f32 %v1287, 0.0
    %v1291 = vpack.c.bf16 %v1290, %v1290
    %v1293 = vsel %vm249, %v1291, 0
    %1295 = vmatprep.subr.bf16.mxu0 0
    %1296 = vmatpush1.bf16.msra.mxu0 %v1293
    %1297 = vmatprep.subr.bf16.mxu0 0
    %1298 = vmatpush1.bf16.msra.mxu0 0
    %1299 = vmatprep.subr.bf16.mxu0 0
    %1300 = vmatpush1.bf16.msra.mxu0 0
    %1301 = vmatprep.subr.bf16.mxu0 0
    %1302 = vmatpush1.bf16.msra.mxu0 0
    %1303 = vmatprep.subr.bf16.mxu0 0
    %1304 = vmatpush1.bf16.msra.mxu0 0
    %1305 = vmatprep.subr.bf16.mxu0 0
    %1306 = vmatpush1.bf16.msra.mxu0 0
    %1307 = vmatprep.subr.bf16.mxu0 0
    %1308 = vmatpush1.bf16.msra.mxu0 0
    %1309 = vmatprep.subr.bf16.mxu0 0
    %1310 = vmatpush1.bf16.msra.mxu0 0
    %1311 = vmatprep.subr.bf16.mxu0 0
    %1312 = vmatpush1.bf16.msra.mxu0 0
    %1313 = vmatprep.subr.bf16.mxu0 0
    %1314 = vmatpush1.bf16.msra.mxu0 0
    %1315 = vmatprep.subr.bf16.mxu0 0
    %1316 = vmatpush1.bf16.msra.mxu0 0
    %1317 = vmatprep.subr.bf16.mxu0 0
    %1318 = vmatpush1.bf16.msra.mxu0 0
    %1319 = vmatprep.subr.bf16.mxu0 0
    %1320 = vmatpush1.bf16.msra.mxu0 0
    %1321 = vmatprep.subr.bf16.mxu0 0
    %1322 = vmatpush1.bf16.msra.mxu0 0
    %1323 = vmatprep.subr.bf16.mxu0 0
    %1324 = vmatpush1.bf16.msra.mxu0 0
    %1325 = vmatprep.subr.bf16.mxu0 0
    %1326 = vmatpush1.bf16.msra.mxu0 0
    %1327 = vmatprep.mubr.bf16.mxu0 0
    %1328 = vmatmul.mubr.bf16.gmra.mrb[0].mxu0 %v327
    %v1329 = vpop.f32.mrb[0].mxu0
    %v1330 = vadd.f32 0.0, %v1329
    %v1331 = vpop.f32.mrb[0].mxu0
    %v1332 = vpop.f32.mrb[0].mxu0
    %v1333 = vpop.f32.mrb[0].mxu0
    %1334 = vdwg.mxu0
    %v1335 = vld [vmem:[#allocation5 + $0x550] sm:$0xff]
    %v1336 = vld [vmem:[#allocation5 + $0x560] sm:$0xff]
    %v1337 = vld [vmem:[#allocation5 + $0x570] sm:$0xff]
    %v1338 = vld [vmem:[#allocation5 + $0x580] sm:$0xff]
    %v1339 = vld [vmem:[#allocation5 + $0x590] sm:$0xf]
    %v1340 = vld [vmem:[#allocation5 + $0x5a0] ss:$0 sm:$0xff]
    %v1342 = vsel %vm245, %v1330, 0
    %v1345 = vsel %vm249, %v1339, 0
    %1347 = vmatprep.subr.mxu0 0.0
    %1348 = vmatpush1.msra.mxu0 %v1335
    %1349 = vmatprep.subr.mxu0 0.0
    %1350 = vmatpush1.msra.mxu0 %v1336
    %1351 = vmatprep.subr.mxu0 0.0
    %1352 = vmatpush1.msra.mxu0 %v1337
    %1353 = vmatprep.subr.mxu0 0.0
    %1354 = vmatpush1.msra.mxu0 %v1338
    %1355 = vmatprep.subr.mxu0 0.0
    %1356 = vmatpush1.msra.mxu0 %v1345
    %1357 = vmatprep.subr.mxu0 0.0
    %1358 = vmatpush1.msra.mxu0 0.0
    %1359 = vmatprep.subr.mxu0 0.0
    %1360 = vmatpush1.msra.mxu0 0.0
    %1361 = vmatprep.subr.mxu0 0.0
    %1362 = vmatpush1.msra.mxu0 0.0
    %1363 = vmatprep.subr.mxu0 0.0
    %1364 = vmatpush1.msra.mxu0 0.0
    %1365 = vmatprep.subr.mxu0 0.0
    %1366 = vmatpush1.msra.mxu0 0.0
    %1367 = vmatprep.subr.mxu0 0.0
    %1368 = vmatpush1.msra.mxu0 0.0
    %1369 = vmatprep.subr.mxu0 0.0
    %1370 = vmatpush1.msra.mxu0 0.0
    %1371 = vmatprep.subr.mxu0 0.0
    %1372 = vmatpush1.msra.mxu0 0.0
    %1373 = vmatprep.subr.mxu0 0.0
    %1374 = vmatpush1.msra.mxu0 0.0
    %1375 = vmatprep.subr.mxu0 0.0
    %1376 = vmatpush1.msra.mxu0 0.0
    %1377 = vmatprep.subr.mxu0 0.0
    %1378 = vmatpush1.msra.mxu0 0.0
    %1379 = vmatprep.subr.mxu0 0.0
    %1380 = vmatpush1.msra.mxu0 0.0
    %1381 = vmatprep.subr.mxu0 0.0
    %1382 = vmatpush1.msra.mxu0 0.0
    %1383 = vmatprep.subr.mxu0 0.0
    %1384 = vmatpush1.msra.mxu0 0.0
    %1385 = vmatprep.subr.mxu0 0.0
    %1386 = vmatpush1.msra.mxu0 0.0
    %1387 = vmatprep.subr.mxu0 0.0
    %1388 = vmatpush1.msra.mxu0 0.0
    %1389 = vmatprep.subr.mxu0 0.0
    %1390 = vmatpush1.msra.mxu0 0.0
    %1391 = vmatprep.subr.mxu0 0.0
    %1392 = vmatpush1.msra.mxu0 0.0
    %1393 = vmatprep.subr.mxu0 0.0
    %1394 = vmatpush1.msra.mxu0 0.0
    %1395 = vmatprep.subr.mxu0 0.0
    %1396 = vmatpush1.msra.mxu0 0.0
    %1397 = vmatprep.subr.mxu0 0.0
    %1398 = vmatpush1.msra.mxu0 0.0
    %1399 = vmatprep.subr.mxu0 0.0
    %1400 = vmatpush1.msra.mxu0 0.0
    %1401 = vmatprep.subr.mxu0 0.0
    %1402 = vmatpush1.msra.mxu0 0.0
    %1403 = vmatprep.subr.mxu0 0.0
    %1404 = vmatpush1.msra.mxu0 0.0
    %1405 = vmatprep.subr.mxu0 0.0
    %1406 = vmatpush1.msra.mxu0 0.0
    %1407 = vmatprep.subr.mxu0 0.0
    %1408 = vmatpush1.msra.mxu0 0.0
    %1409 = vmatprep.subr.mxu0 0.0
    %1410 = vmatpush1.msra.mxu0 0.0
    %1411 = vmatprep.mubr.f32.mxu0 0.0
    %1412 = vmatmul.mubr.f32.gmra.mrb[0].mxu0 %v1342
    %v1413 = vpop.f32.mrb[0].mxu0
    %v1414 = vadd.f32 %v1340, %v1413
    %v1415 = vpop.f32.mrb[0].mxu0
    %1416 = vdwg.mxu0
    %v1417 = vmax.f32 %v1414, 0.0
    %v1418 = vadd.f32 %v1417, %v1162
    %v1419 = vpack.c.bf16 %v1418, %v1418
    %v1421 = vsel %vm249, %v1419, 0
    %1423 = vmatprep.subr.bf16.mxu0 0
    %1424 = vmatpush1.bf16.msra.mxu0 %v1421
    %1425 = vmatprep.subr.bf16.mxu0 0
    %1426 = vmatpush1.bf16.msra.mxu0 0
    %1427 = vmatprep.subr.bf16.mxu0 0
    %1428 = vmatpush1.bf16.msra.mxu0 0
    %1429 = vmatprep.subr.bf16.mxu0 0
    %1430 = vmatpush1.bf16.msra.mxu0 0
    %1431 = vmatprep.subr.bf16.mxu0 0
    %1432 = vmatpush1.bf16.msra.mxu0 0
    %1433 = vmatprep.subr.bf16.mxu0 0
    %1434 = vmatpush1.bf16.msra.mxu0 0
    %1435 = vmatprep.subr.bf16.mxu0 0
    %1436 = vmatpush1.bf16.msra.mxu0 0
    %1437 = vmatprep.subr.bf16.mxu0 0
    %1438 = vmatpush1.bf16.msra.mxu0 0
    %1439 = vmatprep.subr.bf16.mxu0 0
    %1440 = vmatpush1.bf16.msra.mxu0 0
    %1441 = vmatprep.subr.bf16.mxu0 0
    %1442 = vmatpush1.bf16.msra.mxu0 0
    %1443 = vmatprep.subr.bf16.mxu0 0
    %1444 = vmatpush1.bf16.msra.mxu0 0
    %1445 = vmatprep.subr.bf16.mxu0 0
    %1446 = vmatpush1.bf16.msra.mxu0 0
    %1447 = vmatprep.subr.bf16.mxu0 0
    %1448 = vmatpush1.bf16.msra.mxu0 0
    %1449 = vmatprep.subr.bf16.mxu0 0
    %1450 = vmatpush1.bf16.msra.mxu0 0
    %1451 = vmatprep.subr.bf16.mxu0 0
    %1452 = vmatpush1.bf16.msra.mxu0 0
    %1453 = vmatprep.subr.bf16.mxu0 0
    %1454 = vmatpush1.bf16.msra.mxu0 0
    %1455 = vmatprep.mubr.bf16.mxu0 0
    %1456 = vmatmul.mubr.bf16.gmra.mrb[0].mxu0 %v327
    %v1457 = vpop.f32.mrb[0].mxu0
    %v1458 = vadd.f32 0.0, %v1457
    %v1459 = vpop.f32.mrb[0].mxu0
    %v1460 = vpop.f32.mrb[0].mxu0
    %v1461 = vpop.f32.mrb[0].mxu0
    %1462 = vdwg.mxu0
    %v1463 = vld [vmem:[#allocation5 + $0x5b0] sm:$0xff]
    %v1464 = vld [vmem:[#allocation5 + $0x5b8] sm:$0xff]
    %v1465 = vld [vmem:[#allocation5 + $0x5c0] sm:$0xff]
    %v1466 = vld [vmem:[#allocation5 + $0x5c8] sm:$0xff]
    %v1467 = vld [vmem:[#allocation5 + $0x5d0] sm:$0xff]
    %v1468 = vld [vmem:[#allocation5 + $0x5d8] sm:$0xff]
    %v1469 = vld [vmem:[#allocation5 + $0x5e0] sm:$0xff]
    %v1470 = vld [vmem:[#allocation5 + $0x5e8] sm:$0xff]
    %v1471 = vld [vmem:[#allocation5 + $0x5f0] sm:$0xf]
    %v1472 = vld [vmem:[#allocation5 + $0x5f8] sm:$0xf]
    %s1473 = scalar_lea.vmem [#allocation5], 1536
    %v1474 = vld [vmem:[%s1473] ss:$8 sm:$0x3]
    %v1476 = vlaneseq
    %v1477 = vshrl.u32 %v1476, 7
    %v1478 = vsub.s32 0, %v1477
    %v1479 = vrot.slane %v1474, %v1478
    %v1480 = vlaneseq
    %v1481 = vshrl.u32 %v1480, 7
    %v1482 = vsub.s32 1, %v1481
    %v1483 = vrot.slane %v1474, %v1482
    %v1487 = vsel %vm245, %v1458, 0
    %v1490 = vsel %vm249, %v1471, 0
    %v1493 = vsel %vm249, %v1472, 0
    %1495 = vmatprep.subr.mxu0 %v1464
    %1496 = vmatpush1.msra.mxu0 %v1463
    %1497 = vmatprep.subr.mxu0 %v1466
    %1498 = vmatpush1.msra.mxu0 %v1465
    %1499 = vmatprep.subr.mxu0 %v1468
    %1500 = vmatpush1.msra.mxu0 %v1467
    %1501 = vmatprep.subr.mxu0 %v1470
    %1502 = vmatpush1.msra.mxu0 %v1469
    %1503 = vmatprep.subr.mxu0 %v1493
    %1504 = vmatpush1.msra.mxu0 %v1490
    %1505 = vmatprep.subr.mxu0 0.0
    %1506 = vmatpush1.msra.mxu0 0.0
    %1507 = vmatprep.subr.mxu0 0.0
    %1508 = vmatpush1.msra.mxu0 0.0
    %1509 = vmatprep.subr.mxu0 0.0
    %1510 = vmatpush1.msra.mxu0 0.0
    %1511 = vmatprep.subr.mxu0 0.0
    %1512 = vmatpush1.msra.mxu0 0.0
    %1513 = vmatprep.subr.mxu0 0.0
    %1514 = vmatpush1.msra.mxu0 0.0
    %1515 = vmatprep.subr.mxu0 0.0
    %1516 = vmatpush1.msra.mxu0 0.0
    %1517 = vmatprep.subr.mxu0 0.0
    %1518 = vmatpush1.msra.mxu0 0.0
    %1519 = vmatprep.subr.mxu0 0.0
    %1520 = vmatpush1.msra.mxu0 0.0
    %1521 = vmatprep.subr.mxu0 0.0
    %1522 = vmatpush1.msra.mxu0 0.0
    %1523 = vmatprep.subr.mxu0 0.0
    %1524 = vmatpush1.msra.mxu0 0.0
    %1525 = vmatprep.subr.mxu0 0.0
    %1526 = vmatpush1.msra.mxu0 0.0
    %1527 = vmatprep.subr.mxu0 0.0
    %1528 = vmatpush1.msra.mxu0 0.0
    %1529 = vmatprep.subr.mxu0 0.0
    %1530 = vmatpush1.msra.mxu0 0.0
    %1531 = vmatprep.subr.mxu0 0.0
    %1532 = vmatpush1.msra.mxu0 0.0
    %1533 = vmatprep.subr.mxu0 0.0
    %1534 = vmatpush1.msra.mxu0 0.0
    %1535 = vmatprep.subr.mxu0 0.0
    %1536 = vmatpush1.msra.mxu0 0.0
    %1537 = vmatprep.subr.mxu0 0.0
    %1538 = vmatpush1.msra.mxu0 0.0
    %1539 = vmatprep.subr.mxu0 0.0
    %1540 = vmatpush1.msra.mxu0 0.0
    %1541 = vmatprep.subr.mxu0 0.0
    %1542 = vmatpush1.msra.mxu0 0.0
    %1543 = vmatprep.subr.mxu0 0.0
    %1544 = vmatpush1.msra.mxu0 0.0
    %1545 = vmatprep.subr.mxu0 0.0
    %1546 = vmatpush1.msra.mxu0 0.0
    %1547 = vmatprep.subr.mxu0 0.0
    %1548 = vmatpush1.msra.mxu0 0.0
    %1549 = vmatprep.subr.mxu0 0.0
    %1550 = vmatpush1.msra.mxu0 0.0
    %1551 = vmatprep.subr.mxu0 0.0
    %1552 = vmatpush1.msra.mxu0 0.0
    %1553 = vmatprep.subr.mxu0 0.0
    %1554 = vmatpush1.msra.mxu0 0.0
    %1555 = vmatprep.subr.mxu0 0.0
    %1556 = vmatpush1.msra.mxu0 0.0
    %1557 = vmatprep.subr.mxu0 0.0
    %1558 = vmatpush1.msra.mxu0 0.0
    %1559 = vmatprep.mubr.f32.mxu0 0.0
    %1560 = vmatmul.mubr.f32.gmra.mrb[0].mxu0 %v1487
    %v1561 = vpop.f32.mrb[0].mxu0
    %v1562 = vadd.f32 %v1479, %v1561
    %v1563 = vpop.f32.mrb[0].mxu0
    %v1564 = vadd.f32 %v1483, %v1563
    %1565 = vdwg.mxu0
    %v1566 = vmax.f32 %v1562, 0.0
    %v1567 = vmax.f32 %v1564, 0.0
    %1568 = vst [vmem:[#allocation7] sm:$0xff] %v1566
    %1569 = vst [vmem:[#allocation7 + $0x8] sm:$0xff] %v1567
    // Predicated region
    $region30: #{tpu_custom_call.1} parent=1 // pred_check
      _
    $region31: #{tpu_custom_call.1} parent=1 // pred_check_branch
      %1571 = sbr.rel (0) target = $region33
    $region32: #{tpu_custom_call.1} parent=1 // pred_region
      %s1573 = ssub.s32 256, 256
      %1574 = vsyncadd [#allocation4], %s1573
      %s1576 = sshll.u32 [#allocation7], 4
      %s1577 = int_to_ptr.vmem [resolvable:$true] %s1576
      %1579 = dma.vmem_to_hbm [thread:$0]  %s1577, 256, %s5, [#allocation4]
    $region33: #{tpu_custom_call.1} parent=1 // pred_fallthru
      _
    // Predicated region
    $region34: #{tpu_custom_call.1} parent=1 // pred_check
      _
    $region35: #{tpu_custom_call.1} parent=1 // pred_check_branch
      %1581 = sbr.rel (0) target = $region37
    $region36: #{tpu_custom_call.1} parent=1 // pred_region
      %1582 = dma.done [#allocation4], 256
    $region37: #{tpu_custom_call.1} parent=1 // pred_fallthru
      _
    %1583 = vsyncpa [#allocation3], 1
    %1584 = vsyncpa [#allocation6], 1
    %1585 = vsyncpa [#allocation4], 1

</llo_original>
